<compile_context>
chip_gen: v7x
topology: tpu7x:2x2x1
jax: 0.10.0
libtpu: 0.0.40
codegen_flags: <defaults>
</compile_context>

<pallas_src>
import numpy as np
import jax
import jax.numpy as jnp
from jax.experimental import pallas as pl
from jax.experimental.pallas import tpu as pltpu

NUM_VERTS = 778
VPAD = 896                        # 778 padded up to a multiple of 128 (7 * 128) for lane density
NUM_JOINTS = 16
NUM_BETAS = 10
NCOMPS = 45                       # use_pca=True, ncomps=45 -> pose input is [B, 48]
POSE_FEAT = 9 * (NUM_JOINTS - 1)  # 135
POSE_FEAT_PAD = 144               # padded to a multiple of 8 (tile-aligned matmul K)

MANO_PARENTS = (-1, 0, 1, 2, 0, 4, 5, 0, 7, 8, 0, 10, 11, 0, 13, 14)
LEVEL1 = np.array((1, 4, 7, 10, 13), dtype=np.int32)    # children of the root
LEVEL2 = np.array((2, 5, 8, 11, 14), dtype=np.int32)    # children of LEVEL1 (same order)
LEVEL3 = np.array((3, 6, 9, 12, 15), dtype=np.int32)    # children of LEVEL2 (same order)
TIP_VERT_IDS = np.array((745, 317, 444, 556, 673), dtype=np.int32)
JOINT_REORDER = np.array((0, 13, 14, 15, 16, 1, 2, 3, 17, 4, 5, 6,
                          18, 10, 11, 12, 19, 7, 8, 9, 20), dtype=np.int32)


# ----------------------------------------------------------------------------- parameters
def init_mano_params(key):
    ks = jax.random.split(key, 8)
    params = dict(
        v_template=0.1 * jax.random.normal(ks[0], (NUM_VERTS, 3), jnp.float32),
        shapedirs=0.01 * jax.random.normal(ks[1], (NUM_VERTS, 3, NUM_BETAS), jnp.float32),
        posedirs=0.001 * jax.random.normal(ks[2], (NUM_VERTS, 3, POSE_FEAT), jnp.float32),
        j_regressor=jax.nn.softmax(
            jax.random.normal(ks[3], (NUM_JOINTS, NUM_VERTS), jnp.float32), axis=-1),
        weights=jax.nn.softmax(
            4.0 * jax.random.normal(ks[4], (NUM_VERTS, NUM_JOINTS), jnp.float32), axis=-1),
        hands_mean=0.1 * jax.random.normal(ks[5], (NCOMPS,), jnp.float32),
        selected_comps=0.1 * jax.random.normal(ks[6], (NCOMPS, NCOMPS), jnp.float32),
        betas=0.5 * jax.random.normal(ks[7], (NUM_BETAS,), jnp.float32),
    )
    # TODO(synk): th_faces buffer ('f') is topology metadata only (no compute) — omitted.
    return params


def precompute_constants(params):
    """Hoist everything that only depends on betas / fixed buffers (runs once)."""
    v_shaped = params['v_template'] + jnp.einsum(
        'vdk,k->vd', params['shapedirs'], params['betas'])                    # [778, 3]
    J = params['j_regressor'] @ v_shaped                                      # [16, 3]

    # coordinate-major, vertex axis padded to VPAD lanes, pose-feature axis padded to 144
    vs_cm = jnp.zeros((3, VPAD), jnp.float32).at[:, :NUM_VERTS].set(v_shaped.T)
    pd_cm = jnp.zeros((POSE_FEAT_PAD, 3, VPAD), jnp.float32).at[:POSE_FEAT, :, :NUM_VERTS].set(
        jnp.transpose(params['posedirs'], (2, 1, 0)))                         # [144, 3, 896]
    w_t = jnp.zeros((NUM_JOINTS, VPAD), jnp.float32).at[:, :NUM_VERTS].set(
        params['weights'].T)                                                  # [16, 896]

    return dict(
        vs_cm_flat=vs_cm.reshape(1, 3 * VPAD),              # [1, 2688]
        pd_cm_flat=pd_cm.reshape(POSE_FEAT_PAD, 3 * VPAD),  # [144, 2688]
        w_t=w_t,                                            # [16, 896]
        J=J,                                                # [16, 3]
        hands_mean=params['hands_mean'],
        selected_comps=params['selected_comps'],
    )


# ----------------------------------------------------------------------------- glue math
def batch_rodrigues(axisang):
    """[N, 3] axis-angle -> [N, 3, 3] rotation matrices."""
    angle = jnp.sqrt(jnp.sum(axisang * axisang, axis=-1) + 1e-12)
    axis = axisang / angle[:, None]
    c = jnp.cos(angle)[:, None, None]
    s = jnp.sin(angle)[:, None, None]
    x, y, z = axis[:, 0], axis[:, 1], axis[:, 2]
    zeros = jnp.zeros_like(x)
    K = jnp.stack([zeros, -z, y, z, zeros, -x, -y, x, zeros], axis=-1).reshape(-1, 3, 3)
    outer = axis[:, :, None] * axis[:, None, :]
    eye = jnp.eye(3, dtype=axisang.dtype)
    return c * eye + (1.0 - c) * outer + s * K


def _make_T(R, tvec, B):
    """R [B,K,3,3], tvec [K,3] -> homogeneous [B,K,4,4]."""
    K = R.shape[1]
    t_b = jnp.broadcast_to(tvec.reshape(1, K, 3, 1), (B, K, 3, 1))
    top = jnp.concatenate([R, t_b], axis=3)                                   # [B,K,3,4]
    bot = jnp.broadcast_to(
        jnp.array([0.0, 0.0, 0.0, 1.0], R.dtype).reshape(1, 1, 1, 4), (B, K, 1, 4))
    return jnp.concatenate([top, bot], axis=2)                                # [B,K,4,4]


def global_rigid_transforms(rots, J):
    """rots [B,16,3,3], rest joints J [16,3] -> global transforms G [B,16,4,4].

    Kinematic chain batched per tree depth: 3 batched 4x4 multiplies instead of
    15 sequential ones.  All fancy indices are static numpy int arrays (JAX no
    longer accepts python lists as multidimensional indices).
    """
    B = rots.shape[0]

    G0 = _make_T(rots[:, 0:1], J[0:1], B)                                     # [B,1,4,4]
    rel1 = _make_T(rots[:, LEVEL1], J[LEVEL1] - J[0:1], B)                    # parents = root
    rel2 = _make_T(rots[:, LEVEL2], J[LEVEL2] - J[LEVEL1], B)                 # parents = LEVEL1
    rel3 = _make_T(rots[:, LEVEL3], J[LEVEL3] - J[LEVEL2], B)                 # parents = LEVEL2

    G1 = jnp.einsum('bij,bkjm->bkim', G0[:, 0], rel1)                         # [B,5,4,4]
    G2 = jnp.einsum('bkij,bkjm->bkim', G1, rel2)
    G3 = jnp.einsum('bkij,bkjm->bkim', G2, rel3)

    G_all = jnp.concatenate([G0, G1, G2, G3], axis=1)                         # joint order below
    order = np.concatenate((np.array([0], np.int32), LEVEL1, LEVEL2, LEVEL3))
    inv = np.argsort(order)                                                   # inverse permutation
    return G_all[:, inv]                                                      # [B,16,4,4]


# ----------------------------------------------------------------------------- fused kernel
def _make_mano_kernel(b_tile):
    def kernel(pf_ref, a_ref, pd_ref, vs_ref, wt_ref, out_ref):
        # pf_ref  [B_TILE, 144]        per-tile pose features (zero-padded K)
        # a_ref   [16*B_TILE, 16]      per-tile transforms, entry-major rows
        #                              (row = entry*B_TILE + batch, cols = joints)
        # pd_ref  [144, 3*VPAD]        posedirs, coordinate-major, vertex-padded (resident)
        # vs_ref  [1, 3*VPAD]          v_shaped, coordinate-major flat (resident)
        # wt_ref  [16, VPAD]           skinning weights transposed (resident)
        # out_ref [3, B_TILE, VPAD]    skinned vertices, coordinate outermost (dense stores)

        # Pose blend: [B_TILE,144] @ [144, 3*VPAD] on the MXU; lane axis = padded vertices.
        vp = vs_ref[...] + jnp.dot(pf_ref[...], pd_ref[...],
                                   preferred_element_type=jnp.float32)        # [B_TILE, 3*VPAD]
        vpx = vp[:, 0:VPAD]
        vpy = vp[:, VPAD:2 * VPAD]
        vpz = vp[:, 2 * VPAD:3 * VPAD]

        # Per-vertex blended transform entries: [16*B_TILE,16] @ [16,VPAD].
        # T[e*B_TILE + b, v] = sum_j A[b, j, e] * W[v, j]; translation (incl. global
        # trans) is folded in.  Each entry slab is a contiguous, 8-aligned [B_TILE, VPAD].
        T = jnp.dot(a_ref[...], wt_ref[...],
                    preferred_element_type=jnp.float32)                       # [16*B_TILE, VPAD]

        def E(e):
            return T[e * b_tile:(e + 1) * b_tile, :]

        # Apply the 3x4 affine transform per vertex as full-vreg lane/sublane FMAs
        # (no concat, no cross-lane reductions, unmasked stores).
        out_ref[0] = E(0) * vpx + E(1) * vpy + E(2) * vpz + E(3)
        out_ref[1] = E(4) * vpx + E(5) * vpy + E(6) * vpz + E(7)
        out_ref[2] = E(8) * vpx + E(9) * vpy + E(10) * vpz + E(11)

    return kernel


# ----------------------------------------------------------------------------- forward
def mano_forward(consts, p, t):
    B = p.shape[0]

    # Batch tiling: pad B to a multiple of 8 (sublane alignment), tile <= 64
    # (skinning matmul M = 16*B_TILE up to 1024; pose-blend M up to 64).
    b8 = ((B + 7) // 8) * 8
    B_TILE = min(b8, 64)
    n_tiles = (B + B_TILE - 1) // B_TILE
    B_pad = n_tiles * B_TILE

    # --- pose PCA decode: full_pose = [global(3), hands_mean + coeffs @ comps]
    hand_pose = p[:, 3:] @ consts['selected_comps'] + consts['hands_mean']
    full_pose = jnp.concatenate([p[:, :3], hand_pose], axis=1)                # [B, 48]
    rots = batch_rodrigues(full_pose.reshape(B * NUM_JOINTS, 3)).reshape(
        B, NUM_JOINTS, 3, 3)
    eye3 = jnp.eye(3, dtype=jnp.float32)
    pose_feat = (rots[:, 1:] - eye3).reshape(B, POSE_FEAT)                    # [B, 135]
    pf_pad = jnp.zeros((B_pad, POSE_FEAT_PAD), jnp.float32).at[
        :B, :POSE_FEAT].set(pose_feat)                                        # [B_pad, 144]

    # --- kinematic chain (depth-batched glue)
    J = consts['J']
    G = global_rigid_transforms(rots, J)                                      # [B,16,4,4]
    jtr16 = G[:, :, :3, 3]                                                    # [B,16,3]
    Gj = jnp.einsum('bkij,kj->bki', G[:, :, :3, :3], J)
    # Rest-pose removal; fold the global translation into the transforms.
    # (Valid because each skinning-weight row is a softmax and sums to 1.)
    A = G.at[:, :, :3, 3].add(-Gj + t[:, None, :])                            # [B,16,4,4]

    # Entry-major, per-tile flattened A: row = entry*B_TILE + batch_in_tile, cols = joints.
    A_em = jnp.transpose(A.reshape(B, NUM_JOINTS, 16), (2, 0, 1))             # [16 entry, B, 16 joint]
    A_em = jnp.zeros((16, B_pad, NUM_JOINTS), jnp.float32).at[:, :B, :].set(A_em)
    A_tiled = (A_em.reshape(16, n_tiles, B_TILE, NUM_JOINTS)
                   .transpose(1, 0, 2, 3)
                   .reshape(n_tiles * 16 * B_TILE, NUM_JOINTS))               # [n_tiles*16*B_TILE, 16]

    # --- fused pose-blend + LBS kernel, grid over batch tiles
    out = pl.pallas_call(
        _make_mano_kernel(B_TILE),
        grid=(n_tiles,),
        in_specs=[
            pl.BlockSpec((B_TILE, POSE_FEAT_PAD), lambda b: (b, 0)),
            pl.BlockSpec((16 * B_TILE, NUM_JOINTS), lambda b: (b, 0)),
            pl.BlockSpec((POSE_FEAT_PAD, 3 * VPAD), lambda b: (0, 0)),   # resident constant
            pl.BlockSpec((1, 3 * VPAD), lambda b: (0, 0)),               # resident constant
            pl.BlockSpec((NUM_JOINTS, VPAD), lambda b: (0, 0)),          # resident constant
        ],
        out_specs=pl.BlockSpec((3, B_TILE, VPAD), lambda b: (0, b, 0)),
        out_shape=jax.ShapeDtypeStruct((3, B_pad, VPAD), jnp.float32),
        compiler_params=pltpu.CompilerParams(dimension_semantics=("parallel",)),
    )(pf_pad, A_tiled, consts['pd_cm_flat'], consts['vs_cm_flat'], consts['w_t'])

    # back to [B, 778, 3] (drop batch/vertex padding, coordinate axis last)
    verts = jnp.transpose(out[:, :B, :NUM_VERTS], (1, 2, 0))                  # [B,778,3]

    # --- 21 joints: 16 kinematic joints + 5 fingertips, MANO reordering
    tips = verts[:, TIP_VERT_IDS]                         # translation already applied
    jtr21 = jnp.concatenate([jtr16 + t[:, None, :], tips], axis=1)
    jtr21 = jtr21[:, JOINT_REORDER]

    # manopth scales to millimeters and MANOLayer.forward divides back to meters:
    # an exact no-op, so it is dropped here.
    # TODO(synk): manopth's centering branch for ||t|| == 0 is not implemented (t assumed nonzero).
    return verts, jtr21


# ----------------------------------------------------------------------------- main
if __name__ == "__main__":
    key = jax.random.PRNGKey(0)
    k_params, k_p, k_t = jax.random.split(key, 3)

    params = init_mano_params(k_params)
    consts = precompute_constants(params)   # runs once (beta/topology-constant work)

    B = 2
    p = 0.1 * jax.random.normal(k_p, (B, 48), jnp.float32)   # pose (3 global + 45 pca)
    t = 0.01 * jax.random.normal(k_t, (B, 3), jnp.float32)   # translation

    fwd = jax.jit(mano_forward)
    v, j = fwd(consts, p, t)
    jax.block_until_ready((v, j))

    assert v.shape == (B, NUM_VERTS, 3) and v.dtype == jnp.float32
    assert j.shape == (B, 21, 3) and j.dtype == jnp.float32
    assert bool(jnp.all(jnp.isfinite(v))) and bool(jnp.all(jnp.isfinite(j)))
    print("KERNEL_OK")
</pallas_src>

<mosaic_0001>
module attributes {stable_mosaic.version = 11 : i64} {
  func.func @kernel(%arg0: i32, %arg1: memref<8x144xf32, #tpu.memory_space<vmem>>, %arg2: memref<128x16xf32, #tpu.memory_space<vmem>>, %arg3: memref<144x2688xf32, #tpu.memory_space<vmem>>, %arg4: memref<1x2688xf32, #tpu.memory_space<vmem>>, %arg5: memref<16x896xf32, #tpu.memory_space<vmem>>, %arg6: memref<3x8x896xf32, #tpu.memory_space<vmem>>) attributes {dimension_semantics = [#tpu.dimension_semantics<parallel>], iteration_bounds = array<i64: 1>, scalar_prefetch = 0 : i64, scratch_operands = 0 : i64, tpu.core_type = #tpu.core_type<tc>, window_params = [{transform_indices = @transform_0, window_bounds = array<i64: 8, 144>}, {transform_indices = @transform_1, window_bounds = array<i64: 128, 16>}, {pipeline_mode = #tpu.pipeline_mode<synchronous>, transform_indices = @transform_2, window_bounds = array<i64: 144, 2688>}, {pipeline_mode = #tpu.pipeline_mode<synchronous>, transform_indices = @transform_3, window_bounds = array<i64: 1, 2688>}, {pipeline_mode = #tpu.pipeline_mode<synchronous>, transform_indices = @transform_4, window_bounds = array<i64: 16, 896>}, {transform_indices = @transform_5, window_bounds = array<i64: 3, 8, 896>}]} {
    %c0 = arith.constant 0 : index
    %c0_0 = arith.constant 0 : index
    %0 = vector.load %arg4[%c0, %c0_0] : memref<1x2688xf32, #tpu.memory_space<vmem>>, vector<1x2688xf32>
    %c0_1 = arith.constant 0 : index
    %c0_2 = arith.constant 0 : index
    %1 = vector.load %arg1[%c0_1, %c0_2] : memref<8x144xf32, #tpu.memory_space<vmem>>, vector<8x144xf32>
    %c0_3 = arith.constant 0 : index
    %c0_4 = arith.constant 0 : index
    %2 = vector.load %arg3[%c0_3, %c0_4] : memref<144x2688xf32, #tpu.memory_space<vmem>>, vector<144x2688xf32>
    %cst = arith.constant dense<0.000000e+00> : vector<8x2688xf32>
    %3 = tpu.matmul %1, %2, %cst {dimension_numbers = #tpu.dot_dimension_numbers<[1], [0], [0], [1], [0, 0, 1, 1], [], []>} : vector<8x144xf32>, vector<144x2688xf32>, vector<8x2688xf32> -> vector<8x2688xf32>
    %4 = vector.broadcast %0 : vector<1x2688xf32> to vector<8x2688xf32>
    %5 = arith.addf %4, %3 : vector<8x2688xf32>
    %6 = vector.extract_strided_slice %5 {offsets = [0, 0], sizes = [8, 896], strides = [1, 1]} : vector<8x2688xf32> to vector<8x896xf32>
    %7 = vector.extract_strided_slice %5 {offsets = [0, 896], sizes = [8, 896], strides = [1, 1]} : vector<8x2688xf32> to vector<8x896xf32>
    %8 = vector.extract_strided_slice %5 {offsets = [0, 1792], sizes = [8, 896], strides = [1, 1]} : vector<8x2688xf32> to vector<8x896xf32>
    %c0_5 = arith.constant 0 : index
    %c0_6 = arith.constant 0 : index
    %9 = vector.load %arg2[%c0_5, %c0_6] : memref<128x16xf32, #tpu.memory_space<vmem>>, vector<128x16xf32>
    %c0_7 = arith.constant 0 : index
    %c0_8 = arith.constant 0 : index
    %10 = vector.load %arg5[%c0_7, %c0_8] : memref<16x896xf32, #tpu.memory_space<vmem>>, vector<16x896xf32>
    %cst_9 = arith.constant dense<0.000000e+00> : vector<128x896xf32>
    %11 = tpu.matmul %9, %10, %cst_9 {dimension_numbers = #tpu.dot_dimension_numbers<[1], [0], [0], [1], [0, 0, 1, 1], [], []>} : vector<128x16xf32>, vector<16x896xf32>, vector<128x896xf32> -> vector<128x896xf32>
    %12 = vector.extract_strided_slice %11 {offsets = [0, 0], sizes = [8, 896], strides = [1, 1]} : vector<128x896xf32> to vector<8x896xf32>
    %13 = arith.mulf %12, %6 : vector<8x896xf32>
    %14 = vector.extract_strided_slice %11 {offsets = [8, 0], sizes = [8, 896], strides = [1, 1]} : vector<128x896xf32> to vector<8x896xf32>
    %15 = arith.mulf %14, %7 : vector<8x896xf32>
    %16 = arith.addf %13, %15 : vector<8x896xf32>
    %17 = vector.extract_strided_slice %11 {offsets = [16, 0], sizes = [8, 896], strides = [1, 1]} : vector<128x896xf32> to vector<8x896xf32>
    %18 = arith.mulf %17, %8 : vector<8x896xf32>
    %19 = arith.addf %16, %18 : vector<8x896xf32>
    %20 = vector.extract_strided_slice %11 {offsets = [24, 0], sizes = [8, 896], strides = [1, 1]} : vector<128x896xf32> to vector<8x896xf32>
    %21 = arith.addf %19, %20 : vector<8x896xf32>
    %c0_10 = arith.constant 0 : index
    %c0_11 = arith.constant 0 : index
    %c0_12 = arith.constant 0 : index
    %22 = vector.load %arg6[%c0_10, %c0_11, %c0_12] : memref<3x8x896xf32, #tpu.memory_space<vmem>>, vector<1x8x896xf32>
    %23 = vector.shape_cast %22 : vector<1x8x896xf32> to vector<8x896xf32>
    %24 = vector.shape_cast %21 : vector<8x896xf32> to vector<1x8x896xf32>
    tpu.vector_store %arg6[%c0_10, %c0_11, %c0_12], %24 {strides = array<i32>} : memref<3x8x896xf32, #tpu.memory_space<vmem>>, vector<1x8x896xf32>,
    %25 = vector.extract_strided_slice %11 {offsets = [32, 0], sizes = [8, 896], strides = [1, 1]} : vector<128x896xf32> to vector<8x896xf32>
    %26 = arith.mulf %25, %6 : vector<8x896xf32>
    %27 = vector.extract_strided_slice %11 {offsets = [40, 0], sizes = [8, 896], strides = [1, 1]} : vector<128x896xf32> to vector<8x896xf32>
    %28 = arith.mulf %27, %7 : vector<8x896xf32>
    %29 = arith.addf %26, %28 : vector<8x896xf32>
    %30 = vector.extract_strided_slice %11 {offsets = [48, 0], sizes = [8, 896], strides = [1, 1]} : vector<128x896xf32> to vector<8x896xf32>
    %31 = arith.mulf %30, %8 : vector<8x896xf32>
    %32 = arith.addf %29, %31 : vector<8x896xf32>
    %33 = vector.extract_strided_slice %11 {offsets = [56, 0], sizes = [8, 896], strides = [1, 1]} : vector<128x896xf32> to vector<8x896xf32>
    %34 = arith.addf %32, %33 : vector<8x896xf32>
    %c1 = arith.constant 1 : index
    %c0_13 = arith.constant 0 : index
    %c0_14 = arith.constant 0 : index
    %35 = vector.load %arg6[%c1, %c0_13, %c0_14] : memref<3x8x896xf32, #tpu.memory_space<vmem>>, vector<1x8x896xf32>
    %36 = vector.shape_cast %35 : vector<1x8x896xf32> to vector<8x896xf32>
    %37 = vector.shape_cast %34 : vector<8x896xf32> to vector<1x8x896xf32>
    tpu.vector_store %arg6[%c1, %c0_13, %c0_14], %37 {strides = array<i32>} : memref<3x8x896xf32, #tpu.memory_space<vmem>>, vector<1x8x896xf32>,
    %38 = vector.extract_strided_slice %11 {offsets = [64, 0], sizes = [8, 896], strides = [1, 1]} : vector<128x896xf32> to vector<8x896xf32>
    %39 = arith.mulf %38, %6 : vector<8x896xf32>
    %40 = vector.extract_strided_slice %11 {offsets = [72, 0], sizes = [8, 896], strides = [1, 1]} : vector<128x896xf32> to vector<8x896xf32>
    %41 = arith.mulf %40, %7 : vector<8x896xf32>
    %42 = arith.addf %39, %41 : vector<8x896xf32>
    %43 = vector.extract_strided_slice %11 {offsets = [80, 0], sizes = [8, 896], strides = [1, 1]} : vector<128x896xf32> to vector<8x896xf32>
    %44 = arith.mulf %43, %8 : vector<8x896xf32>
    %45 = arith.addf %42, %44 : vector<8x896xf32>
    %46 = vector.extract_strided_slice %11 {offsets = [88, 0], sizes = [8, 896], strides = [1, 1]} : vector<128x896xf32> to vector<8x896xf32>
    %47 = arith.addf %45, %46 : vector<8x896xf32>
    %c2 = arith.constant 2 : index
    %c0_15 = arith.constant 0 : index
    %c0_16 = arith.constant 0 : index
    %48 = vector.load %arg6[%c2, %c0_15, %c0_16] : memref<3x8x896xf32, #tpu.memory_space<vmem>>, vector<1x8x896xf32>
    %49 = vector.shape_cast %48 : vector<1x8x896xf32> to vector<8x896xf32>
    %50 = vector.shape_cast %47 : vector<8x896xf32> to vector<1x8x896xf32>
    tpu.vector_store %arg6[%c2, %c0_15, %c0_16], %50 {strides = array<i32>} : memref<3x8x896xf32, #tpu.memory_space<vmem>>, vector<1x8x896xf32>,
    return
  }
  func.func @transform_0(%arg0: i32) -> (i32, i32) {
    %c0_i32 = arith.constant 0 : i32
    %c0_i32_0 = arith.constant 0 : i32
    return %arg0, %c0_i32 : i32, i32
  }
  func.func @transform_1(%arg0: i32) -> (i32, i32) {
    %c0_i32 = arith.constant 0 : i32
    %c0_i32_0 = arith.constant 0 : i32
    return %arg0, %c0_i32 : i32, i32
  }
  func.func @transform_2(%arg0: i32) -> (i32, i32) {
    %c0_i32 = arith.constant 0 : i32
    %c0_i32_0 = arith.constant 0 : i32
    %c0_i32_1 = arith.constant 0 : i32
    return %c0_i32, %c0_i32_0 : i32, i32
  }
  func.func @transform_3(%arg0: i32) -> (i32, i32) {
    %c0_i32 = arith.constant 0 : i32
    %c0_i32_0 = arith.constant 0 : i32
    %c0_i32_1 = arith.constant 0 : i32
    return %c0_i32, %c0_i32_0 : i32, i32
  }
  func.func @transform_4(%arg0: i32) -> (i32, i32) {
    %c0_i32 = arith.constant 0 : i32
    %c0_i32_0 = arith.constant 0 : i32
    %c0_i32_1 = arith.constant 0 : i32
    return %c0_i32, %c0_i32_0 : i32, i32
  }
  func.func @transform_5(%arg0: i32) -> (i32, i32, i32) {
    %c0_i32 = arith.constant 0 : i32
    %c0_i32_0 = arith.constant 0 : i32
    %c0_i32_1 = arith.constant 0 : i32
    return %c0_i32, %arg0, %c0_i32_0 : i32, i32, i32
  }
}

</mosaic_0001>

<llo_original>
// kernel: mano_forward.1
$region0: #{mano_forward.1}
  #allocation0 [shape = 'u32[]', space=smem, size = 0x4, offset = 0x4, fixed_abs, tag = 'smem constant byte address 0x4 - core index']
  #allocation1 [shape = 'u32[144,128]{1,0:T(1,128)}', space=vmem, size = 0x12000, scoped, tag = 'internal scratch']
  %s0 = inlined_call_operand.vmem [shape: f32[8,144], index: 0, kind: input, shape index: {}]
  %s1 = inlined_call_operand.vmem [shape: f32[128,16], index: 1, kind: input, shape index: {}]
  %s2 = inlined_call_operand.vmem [shape: f32[144,2688], index: 2, kind: input, shape index: {}]
  %s3 = inlined_call_operand.vmem [shape: f32[1,2688], index: 3, kind: input, shape index: {}]
  %s4 = inlined_call_operand.vmem [shape: f32[16,896], index: 4, kind: input, shape index: {}]
  %s5 = inlined_call_operand.vmem [shape: f32[3,8,896], index: 5, kind: output, shape index: {}]
  %s6 = sld [smem:[#allocation0]]
  $region30: #{mano_forward.1} parent=0
    _
  %s8 = ssub.s32 1, %s6
  %s9 = scalar_select 0, %s8, %s6
  // Predicated region
  $region2: #{mano_forward.1} parent=0 // pred_check
    _
  $region3: #{mano_forward.1} parent=0 // pred_check_branch
    %11 = sbr.rel (0) target = $region5
  $region4: #{mano_forward.1} parent=0 // pred_region
    _
  $region5: #{mano_forward.1} parent=0 // pred_fallthru
    _
  // Predicated region
  $region6: #{mano_forward.1} parent=0 // pred_check
    _
  $region7: #{mano_forward.1} parent=0 // pred_check_branch
    %13 = sbr.rel (0) target = $region9
  $region8: #{mano_forward.1} parent=0 // pred_region
    _
  $region9: #{mano_forward.1} parent=0 // pred_fallthru
    _
  // Predicated region
  $region10: #{mano_forward.1} parent=0 // pred_check
    _
  $region11: #{mano_forward.1} parent=0 // pred_check_branch
    %15 = sbr.rel (0) target = $region13
  $region12: #{mano_forward.1} parent=0 // pred_region
    _
  $region13: #{mano_forward.1} parent=0 // pred_fallthru
    _
  // Predicated region
  $region14: #{mano_forward.1} parent=0 // pred_check
    _
  $region15: #{mano_forward.1} parent=0 // pred_check_branch
    %17 = sbr.rel (0) target = $region17
  $region16: #{mano_forward.1} parent=0 // pred_region
    _
  $region17: #{mano_forward.1} parent=0 // pred_fallthru
    _
  // Predicated region
  $region18: #{mano_forward.1} parent=0 // pred_check
    _
  $region19: #{mano_forward.1} parent=0 // pred_check_branch
    %19 = sbr.rel (0) target = $region21
  $region20: #{mano_forward.1} parent=0 // pred_region
    _
  $region21: #{mano_forward.1} parent=0 // pred_fallthru
    _
  %v20 = vld [vmem:[%s3] sm:$0xff]
  %v21 = vld [vmem:[%s3 + $0x8] sm:$0xff]
  %v22 = vld [vmem:[%s3 + $0x10] sm:$0x1f]
  %v23 = vld [vmem:[%s0] sm:$0xff]
  %v24 = vld [vmem:[%s0 + $0x8] sm:$0xff]
  %v25 = vld [vmem:[%s2] sm:$0xff]
  %v26 = vld [vmem:[%s2 + $0x8] sm:$0xff]
  %v27 = vld [vmem:[%s2 + $0x10] sm:$0xff]
  %v28 = vld [vmem:[%s2 + $0x18] sm:$0xff]
  %v29 = vld [vmem:[%s2 + $0x20] sm:$0xff]
  %v30 = vld [vmem:[%s2 + $0x28] sm:$0xff]
  %v31 = vld [vmem:[%s2 + $0x30] sm:$0xff]
  %v32 = vld [vmem:[%s2 + $0x38] sm:$0xff]
  %v33 = vld [vmem:[%s2 + $0x40] sm:$0xff]
  %v34 = vld [vmem:[%s2 + $0x48] sm:$0xff]
  %v35 = vld [vmem:[%s2 + $0x50] sm:$0xff]
  %v36 = vld [vmem:[%s2 + $0x58] sm:$0xff]
  %v37 = vld [vmem:[%s2 + $0x60] sm:$0xff]
  %v38 = vld [vmem:[%s2 + $0x68] sm:$0xff]
  %v39 = vld [vmem:[%s2 + $0x70] sm:$0xff]
  %v40 = vld [vmem:[%s2 + $0x78] sm:$0xff]
  %v41 = vld [vmem:[%s2 + $0x80] sm:$0xff]
  %v42 = vld [vmem:[%s2 + $0x88] sm:$0xff]
  %v43 = vld [vmem:[%s2 + $0x90] sm:$0xff]
  %v44 = vld [vmem:[%s2 + $0x98] sm:$0xff]
  %v45 = vld [vmem:[%s2 + $0xa0] sm:$0xff]
  %v46 = vld [vmem:[%s2 + $0xa8] sm:$0xff]
  %v47 = vld [vmem:[%s2 + $0xb0] sm:$0xff]
  %v48 = vld [vmem:[%s2 + $0xb8] sm:$0xff]
  %v49 = vld [vmem:[%s2 + $0xc0] sm:$0xff]
  %v50 = vld [vmem:[%s2 + $0xc8] sm:$0xff]
  %v51 = vld [vmem:[%s2 + $0xd0] sm:$0xff]
  %v52 = vld [vmem:[%s2 + $0xd8] sm:$0xff]
  %v53 = vld [vmem:[%s2 + $0xe0] sm:$0xff]
  %v54 = vld [vmem:[%s2 + $0xe8] sm:$0xff]
  %v55 = vld [vmem:[%s2 + $0xf0] sm:$0xff]
  %v56 = vld [vmem:[%s2 + $0xf8] sm:$0xff]
  %v57 = vld [vmem:[%s2 + $0x100] sm:$0xff]
  %v58 = vld [vmem:[%s2 + $0x108] sm:$0xff]
  %v59 = vld [vmem:[%s2 + $0x110] sm:$0xff]
  %v60 = vld [vmem:[%s2 + $0x118] sm:$0xff]
  %v61 = vld [vmem:[%s2 + $0x120] sm:$0xff]
  %v62 = vld [vmem:[%s2 + $0x128] sm:$0xff]
  %v63 = vld [vmem:[%s2 + $0x130] sm:$0xff]
  %v64 = vld [vmem:[%s2 + $0x138] sm:$0xff]
  %v65 = vld [vmem:[%s2 + $0x140] sm:$0xff]
  %v66 = vld [vmem:[%s2 + $0x148] sm:$0xff]
  %v67 = vld [vmem:[%s2 + $0x150] sm:$0xff]
  %v68 = vld [vmem:[%s2 + $0x158] sm:$0xff]
  %v69 = vld [vmem:[%s2 + $0x160] sm:$0xff]
  %v70 = vld [vmem:[%s2 + $0x168] sm:$0xff]
  %v71 = vld [vmem:[%s2 + $0x170] sm:$0xff]
  %v72 = vld [vmem:[%s2 + $0x178] sm:$0xff]
  %v73 = vld [vmem:[%s2 + $0x180] sm:$0xff]
  %v74 = vld [vmem:[%s2 + $0x188] sm:$0xff]
  %v75 = vld [vmem:[%s2 + $0x190] sm:$0xff]
  %v76 = vld [vmem:[%s2 + $0x198] sm:$0xff]
  %v77 = vld [vmem:[%s2 + $0x1a0] sm:$0xff]
  %v78 = vld [vmem:[%s2 + $0x1a8] sm:$0xff]
  %v79 = vld [vmem:[%s2 + $0x1b0] sm:$0xff]
  %v80 = vld [vmem:[%s2 + $0x1b8] sm:$0xff]
  %v81 = vld [vmem:[%s2 + $0x1c0] sm:$0xff]
  %v82 = vld [vmem:[%s2 + $0x1c8] sm:$0xff]
  %v83 = vld [vmem:[%s2 + $0x1d0] sm:$0xff]
  %v84 = vld [vmem:[%s2 + $0x1d8] sm:$0xff]
  %v85 = vld [vmem:[%s2 + $0x1e0] sm:$0xff]
  %v86 = vld [vmem:[%s2 + $0x1e8] sm:$0xff]
  %v87 = vld [vmem:[%s2 + $0x1f0] sm:$0xff]
  %v88 = vld [vmem:[%s2 + $0x1f8] sm:$0xff]
  %v89 = vld [vmem:[%s2 + $0x200] sm:$0xff]
  %v90 = vld [vmem:[%s2 + $0x208] sm:$0xff]
  %v91 = vld [vmem:[%s2 + $0x210] sm:$0xff]
  %v92 = vld [vmem:[%s2 + $0x218] sm:$0xff]
  %v93 = vld [vmem:[%s2 + $0x220] sm:$0xff]
  %v94 = vld [vmem:[%s2 + $0x228] sm:$0xff]
  %v95 = vld [vmem:[%s2 + $0x230] sm:$0xff]
  %v96 = vld [vmem:[%s2 + $0x238] sm:$0xff]
  %v97 = vld [vmem:[%s2 + $0x240] sm:$0xff]
  %v98 = vld [vmem:[%s2 + $0x248] sm:$0xff]
  %v99 = vld [vmem:[%s2 + $0x250] sm:$0xff]
  %v100 = vld [vmem:[%s2 + $0x258] sm:$0xff]
  %v101 = vld [vmem:[%s2 + $0x260] sm:$0xff]
  %v102 = vld [vmem:[%s2 + $0x268] sm:$0xff]
  %v103 = vld [vmem:[%s2 + $0x270] sm:$0xff]
  %v104 = vld [vmem:[%s2 + $0x278] sm:$0xff]
  %v105 = vld [vmem:[%s2 + $0x280] sm:$0xff]
  %v106 = vld [vmem:[%s2 + $0x288] sm:$0xff]
  %v107 = vld [vmem:[%s2 + $0x290] sm:$0xff]
  %v108 = vld [vmem:[%s2 + $0x298] sm:$0xff]
  %v109 = vld [vmem:[%s2 + $0x2a0] sm:$0xff]
  %v110 = vld [vmem:[%s2 + $0x2a8] sm:$0xff]
  %v111 = vld [vmem:[%s2 + $0x2b0] sm:$0xff]
  %v112 = vld [vmem:[%s2 + $0x2b8] sm:$0xff]
  %v113 = vld [vmem:[%s2 + $0x2c0] sm:$0xff]
  %v114 = vld [vmem:[%s2 + $0x2c8] sm:$0xff]
  %v115 = vld [vmem:[%s2 + $0x2d0] sm:$0xff]
  %v116 = vld [vmem:[%s2 + $0x2d8] sm:$0xff]
  %v117 = vld [vmem:[%s2 + $0x2e0] sm:$0xff]
  %v118 = vld [vmem:[%s2 + $0x2e8] sm:$0xff]
  %v119 = vld [vmem:[%s2 + $0x2f0] sm:$0xff]
  %v120 = vld [vmem:[%s2 + $0x2f8] sm:$0xff]
  %v121 = vld [vmem:[%s2 + $0x300] sm:$0xff]
  %v122 = vld [vmem:[%s2 + $0x308] sm:$0xff]
  %v123 = vld [vmem:[%s2 + $0x310] sm:$0xff]
  %v124 = vld [vmem:[%s2 + $0x318] sm:$0xff]
  %v125 = vld [vmem:[%s2 + $0x320] sm:$0xff]
  %v126 = vld [vmem:[%s2 + $0x328] sm:$0xff]
  %v127 = vld [vmem:[%s2 + $0x330] sm:$0xff]
  %v128 = vld [vmem:[%s2 + $0x338] sm:$0xff]
  %v129 = vld [vmem:[%s2 + $0x340] sm:$0xff]
  %v130 = vld [vmem:[%s2 + $0x348] sm:$0xff]
  %v131 = vld [vmem:[%s2 + $0x350] sm:$0xff]
  %v132 = vld [vmem:[%s2 + $0x358] sm:$0xff]
  %v133 = vld [vmem:[%s2 + $0x360] sm:$0xff]
  %v134 = vld [vmem:[%s2 + $0x368] sm:$0xff]
  %v135 = vld [vmem:[%s2 + $0x370] sm:$0xff]
  %v136 = vld [vmem:[%s2 + $0x378] sm:$0xff]
  %v137 = vld [vmem:[%s2 + $0x380] sm:$0xff]
  %v138 = vld [vmem:[%s2 + $0x388] sm:$0xff]
  %v139 = vld [vmem:[%s2 + $0x390] sm:$0xff]
  %v140 = vld [vmem:[%s2 + $0x398] sm:$0xff]
  %v141 = vld [vmem:[%s2 + $0x3a0] sm:$0xff]
  %v142 = vld [vmem:[%s2 + $0x3a8] sm:$0xff]
  %v143 = vld [vmem:[%s2 + $0x3b0] sm:$0xff]
  %v144 = vld [vmem:[%s2 + $0x3b8] sm:$0xff]
  %v145 = vld [vmem:[%s2 + $0x3c0] sm:$0xff]
  %v146 = vld [vmem:[%s2 + $0x3c8] sm:$0xff]
  %v147 = vld [vmem:[%s2 + $0x3d0] sm:$0xff]
  %v148 = vld [vmem:[%s2 + $0x3d8] sm:$0xff]
  %v149 = vld [vmem:[%s2 + $0x3e0] sm:$0xff]
  %v150 = vld [vmem:[%s2 + $0x3e8] sm:$0xff]
  %v151 = vld [vmem:[%s2 + $0x3f0] sm:$0xff]
  %v152 = vld [vmem:[%s2 + $0x3f8] sm:$0xff]
  %v153 = vld [vmem:[%s2 + $0x400] sm:$0xff]
  %v154 = vld [vmem:[%s2 + $0x408] sm:$0xff]
  %v155 = vld [vmem:[%s2 + $0x410] sm:$0xff]
  %v156 = vld [vmem:[%s2 + $0x418] sm:$0xff]
  %v157 = vld [vmem:[%s2 + $0x420] sm:$0xff]
  %v158 = vld [vmem:[%s2 + $0x428] sm:$0xff]
  %v159 = vld [vmem:[%s2 + $0x430] sm:$0xff]
  %v160 = vld [vmem:[%s2 + $0x438] sm:$0xff]
  %v161 = vld [vmem:[%s2 + $0x440] sm:$0xff]
  %v162 = vld [vmem:[%s2 + $0x448] sm:$0xff]
  %v163 = vld [vmem:[%s2 + $0x450] sm:$0xff]
  %v164 = vld [vmem:[%s2 + $0x458] sm:$0xff]
  %v165 = vld [vmem:[%s2 + $0x460] sm:$0xff]
  %v166 = vld [vmem:[%s2 + $0x468] sm:$0xff]
  %v167 = vld [vmem:[%s2 + $0x470] sm:$0xff]
  %v168 = vld [vmem:[%s2 + $0x478] sm:$0xff]
  %v169 = vld [vmem:[%s2 + $0x480] sm:$0xff]
  %v170 = vld [vmem:[%s2 + $0x488] sm:$0xff]
  %v171 = vld [vmem:[%s2 + $0x490] sm:$0xff]
  %v172 = vld [vmem:[%s2 + $0x498] sm:$0xff]
  %v173 = vld [vmem:[%s2 + $0x4a0] sm:$0xff]
  %v174 = vld [vmem:[%s2 + $0x4a8] sm:$0xff]
  %v175 = vld [vmem:[%s2 + $0x4b0] sm:$0xff]
  %v176 = vld [vmem:[%s2 + $0x4b8] sm:$0xff]
  %v177 = vld [vmem:[%s2 + $0x4c0] sm:$0xff]
  %v178 = vld [vmem:[%s2 + $0x4c8] sm:$0xff]
  %v179 = vld [vmem:[%s2 + $0x4d0] sm:$0xff]
  %v180 = vld [vmem:[%s2 + $0x4d8] sm:$0xff]
  %v181 = vld [vmem:[%s2 + $0x4e0] sm:$0xff]
  %v182 = vld [vmem:[%s2 + $0x4e8] sm:$0xff]
  %v183 = vld [vmem:[%s2 + $0x4f0] sm:$0xff]
  %v184 = vld [vmem:[%s2 + $0x4f8] sm:$0xff]
  %v185 = vld [vmem:[%s2 + $0x500] sm:$0xff]
  %v186 = vld [vmem:[%s2 + $0x508] sm:$0xff]
  %v187 = vld [vmem:[%s2 + $0x510] sm:$0xff]
  %v188 = vld [vmem:[%s2 + $0x518] sm:$0xff]
  %v189 = vld [vmem:[%s2 + $0x520] sm:$0xff]
  %v190 = vld [vmem:[%s2 + $0x528] sm:$0xff]
  %v191 = vld [vmem:[%s2 + $0x530] sm:$0xff]
  %v192 = vld [vmem:[%s2 + $0x538] sm:$0xff]
  %v193 = vld [vmem:[%s2 + $0x540] sm:$0xff]
  %v194 = vld [vmem:[%s2 + $0x548] sm:$0xff]
  %v195 = vld [vmem:[%s2 + $0x550] sm:$0xff]
  %v196 = vld [vmem:[%s2 + $0x558] sm:$0xff]
  %v197 = vld [vmem:[%s2 + $0x560] sm:$0xff]
  %v198 = vld [vmem:[%s2 + $0x568] sm:$0xff]
  %v199 = vld [vmem:[%s2 + $0x570] sm:$0xff]
  %v200 = vld [vmem:[%s2 + $0x578] sm:$0xff]
  %v201 = vld [vmem:[%s2 + $0x580] sm:$0xff]
  %v202 = vld [vmem:[%s2 + $0x588] sm:$0xff]
  %v203 = vld [vmem:[%s2 + $0x590] sm:$0xff]
  %v204 = vld [vmem:[%s2 + $0x598] sm:$0xff]
  %v205 = vld [vmem:[%s2 + $0x5a0] sm:$0xff]
  %v206 = vld [vmem:[%s2 + $0x5a8] sm:$0xff]
  %v207 = vld [vmem:[%s2 + $0x5b0] sm:$0xff]
  %v208 = vld [vmem:[%s2 + $0x5b8] sm:$0xff]
  %v209 = vld [vmem:[%s2 + $0x5c0] sm:$0xff]
  %v210 = vld [vmem:[%s2 + $0x5c8] sm:$0xff]
  %v211 = vld [vmem:[%s2 + $0x5d0] sm:$0xff]
  %v212 = vld [vmem:[%s2 + $0x5d8] sm:$0xff]
  %v213 = vld [vmem:[%s2 + $0x5e0] sm:$0xff]
  %v214 = vld [vmem:[%s2 + $0x5e8] sm:$0xff]
  %v215 = vld [vmem:[%s2 + $0x5f0] sm:$0xff]
  %v216 = vld [vmem:[%s2 + $0x5f8] sm:$0xff]
  %v217 = vld [vmem:[%s2 + $0x600] sm:$0xff]
  %v218 = vld [vmem:[%s2 + $0x608] sm:$0xff]
  %v219 = vld [vmem:[%s2 + $0x610] sm:$0xff]
  %v220 = vld [vmem:[%s2 + $0x618] sm:$0xff]
  %v221 = vld [vmem:[%s2 + $0x620] sm:$0xff]
  %v222 = vld [vmem:[%s2 + $0x628] sm:$0xff]
  %v223 = vld [vmem:[%s2 + $0x630] sm:$0xff]
  %v224 = vld [vmem:[%s2 + $0x638] sm:$0xff]
  %v225 = vld [vmem:[%s2 + $0x640] sm:$0xff]
  %v226 = vld [vmem:[%s2 + $0x648] sm:$0xff]
  %v227 = vld [vmem:[%s2 + $0x650] sm:$0xff]
  %v228 = vld [vmem:[%s2 + $0x658] sm:$0xff]
  %v229 = vld [vmem:[%s2 + $0x660] sm:$0xff]
  %v230 = vld [vmem:[%s2 + $0x668] sm:$0xff]
  %v231 = vld [vmem:[%s2 + $0x670] sm:$0xff]
  %v232 = vld [vmem:[%s2 + $0x678] sm:$0xff]
  %v233 = vld [vmem:[%s2 + $0x680] sm:$0xff]
  %v234 = vld [vmem:[%s2 + $0x688] sm:$0xff]
  %v235 = vld [vmem:[%s2 + $0x690] sm:$0xff]
  %v236 = vld [vmem:[%s2 + $0x698] sm:$0xff]
  %v237 = vld [vmem:[%s2 + $0x6a0] sm:$0xff]
  %v238 = vld [vmem:[%s2 + $0x6a8] sm:$0xff]
  %v239 = vld [vmem:[%s2 + $0x6b0] sm:$0xff]
  %v240 = vld [vmem:[%s2 + $0x6b8] sm:$0xff]
  %v241 = vld [vmem:[%s2 + $0x6c0] sm:$0xff]
  %v242 = vld [vmem:[%s2 + $0x6c8] sm:$0xff]
  %v243 = vld [vmem:[%s2 + $0x6d0] sm:$0xff]
  %v244 = vld [vmem:[%s2 + $0x6d8] sm:$0xff]
  %v245 = vld [vmem:[%s2 + $0x6e0] sm:$0xff]
  %v246 = vld [vmem:[%s2 + $0x6e8] sm:$0xff]
  %v247 = vld [vmem:[%s2 + $0x6f0] sm:$0xff]
  %v248 = vld [vmem:[%s2 + $0x6f8] sm:$0xff]
  %v249 = vld [vmem:[%s2 + $0x700] sm:$0xff]
  %v250 = vld [vmem:[%s2 + $0x708] sm:$0xff]
  %v251 = vld [vmem:[%s2 + $0x710] sm:$0xff]
  %v252 = vld [vmem:[%s2 + $0x718] sm:$0xff]
  %v253 = vld [vmem:[%s2 + $0x720] sm:$0xff]
  %v254 = vld [vmem:[%s2 + $0x728] sm:$0xff]
  %v255 = vld [vmem:[%s2 + $0x730] sm:$0xff]
  %v256 = vld [vmem:[%s2 + $0x738] sm:$0xff]
  %v257 = vld [vmem:[%s2 + $0x740] sm:$0xff]
  %v258 = vld [vmem:[%s2 + $0x748] sm:$0xff]
  %v259 = vld [vmem:[%s2 + $0x750] sm:$0xff]
  %v260 = vld [vmem:[%s2 + $0x758] sm:$0xff]
  %v261 = vld [vmem:[%s2 + $0x760] sm:$0xff]
  %v262 = vld [vmem:[%s2 + $0x768] sm:$0xff]
  %v263 = vld [vmem:[%s2 + $0x770] sm:$0xff]
  %v264 = vld [vmem:[%s2 + $0x778] sm:$0xff]
  %v265 = vld [vmem:[%s2 + $0x780] sm:$0xff]
  %v266 = vld [vmem:[%s2 + $0x788] sm:$0xff]
  %v267 = vld [vmem:[%s2 + $0x790] sm:$0xff]
  %v268 = vld [vmem:[%s2 + $0x798] sm:$0xff]
  %v269 = vld [vmem:[%s2 + $0x7a0] sm:$0xff]
  %v270 = vld [vmem:[%s2 + $0x7a8] sm:$0xff]
  %v271 = vld [vmem:[%s2 + $0x7b0] sm:$0xff]
  %v272 = vld [vmem:[%s2 + $0x7b8] sm:$0xff]
  %v273 = vld [vmem:[%s2 + $0x7c0] sm:$0xff]
  %v274 = vld [vmem:[%s2 + $0x7c8] sm:$0xff]
  %v275 = vld [vmem:[%s2 + $0x7d0] sm:$0xff]
  %v276 = vld [vmem:[%s2 + $0x7d8] sm:$0xff]
  %v277 = vld [vmem:[%s2 + $0x7e0] sm:$0xff]
  %v278 = vld [vmem:[%s2 + $0x7e8] sm:$0xff]
  %v279 = vld [vmem:[%s2 + $0x7f0] sm:$0xff]
  %v280 = vld [vmem:[%s2 + $0x7f8] sm:$0xff]
  %v281 = vld [vmem:[%s2 + $0x800] sm:$0xff]
  %v282 = vld [vmem:[%s2 + $0x808] sm:$0xff]
  %v283 = vld [vmem:[%s2 + $0x810] sm:$0xff]
  %v284 = vld [vmem:[%s2 + $0x818] sm:$0xff]
  %v285 = vld [vmem:[%s2 + $0x820] sm:$0xff]
  %v286 = vld [vmem:[%s2 + $0x828] sm:$0xff]
  %v287 = vld [vmem:[%s2 + $0x830] sm:$0xff]
  %v288 = vld [vmem:[%s2 + $0x838] sm:$0xff]
  %v289 = vld [vmem:[%s2 + $0x840] sm:$0xff]
  %v290 = vld [vmem:[%s2 + $0x848] sm:$0xff]
  %v291 = vld [vmem:[%s2 + $0x850] sm:$0xff]
  %v292 = vld [vmem:[%s2 + $0x858] sm:$0xff]
  %v293 = vld [vmem:[%s2 + $0x860] sm:$0xff]
  %v294 = vld [vmem:[%s2 + $0x868] sm:$0xff]
  %v295 = vld [vmem:[%s2 + $0x870] sm:$0xff]
  %v296 = vld [vmem:[%s2 + $0x878] sm:$0xff]
  %v297 = vld [vmem:[%s2 + $0x880] sm:$0xff]
  %v298 = vld [vmem:[%s2 + $0x888] sm:$0xff]
  %v299 = vld [vmem:[%s2 + $0x890] sm:$0xff]
  %v300 = vld [vmem:[%s2 + $0x898] sm:$0xff]
  %v301 = vld [vmem:[%s2 + $0x8a0] sm:$0xff]
  %v302 = vld [vmem:[%s2 + $0x8a8] sm:$0xff]
  %v303 = vld [vmem:[%s2 + $0x8b0] sm:$0xff]
  %v304 = vld [vmem:[%s2 + $0x8b8] sm:$0xff]
  %v305 = vld [vmem:[%s2 + $0x8c0] sm:$0xff]
  %v306 = vld [vmem:[%s2 + $0x8c8] sm:$0xff]
  %v307 = vld [vmem:[%s2 + $0x8d0] sm:$0xff]
  %v308 = vld [vmem:[%s2 + $0x8d8] sm:$0xff]
  %v309 = vld [vmem:[%s2 + $0x8e0] sm:$0xff]
  %v310 = vld [vmem:[%s2 + $0x8e8] sm:$0xff]
  %v311 = vld [vmem:[%s2 + $0x8f0] sm:$0xff]
  %v312 = vld [vmem:[%s2 + $0x8f8] sm:$0xff]
  %v313 = vld [vmem:[%s2 + $0x900] sm:$0xff]
  %v314 = vld [vmem:[%s2 + $0x908] sm:$0xff]
  %v315 = vld [vmem:[%s2 + $0x910] sm:$0xff]
  %v316 = vld [vmem:[%s2 + $0x918] sm:$0xff]
  %v317 = vld [vmem:[%s2 + $0x920] sm:$0xff]
  %v318 = vld [vmem:[%s2 + $0x928] sm:$0xff]
  %v319 = vld [vmem:[%s2 + $0x930] sm:$0xff]
  %v320 = vld [vmem:[%s2 + $0x938] sm:$0xff]
  %v321 = vld [vmem:[%s2 + $0x940] sm:$0xff]
  %v322 = vld [vmem:[%s2 + $0x948] sm:$0xff]
  %v323 = vld [vmem:[%s2 + $0x950] sm:$0xff]
  %v324 = vld [vmem:[%s2 + $0x958] sm:$0xff]
  %v325 = vld [vmem:[%s2 + $0x960] sm:$0xff]
  %v326 = vld [vmem:[%s2 + $0x968] sm:$0xff]
  %v327 = vld [vmem:[%s2 + $0x970] sm:$0xff]
  %v328 = vld [vmem:[%s2 + $0x978] sm:$0xff]
  %v329 = vld [vmem:[%s2 + $0x980] sm:$0xff]
  %v330 = vld [vmem:[%s2 + $0x988] sm:$0xff]
  %v331 = vld [vmem:[%s2 + $0x990] sm:$0xff]
  %v332 = vld [vmem:[%s2 + $0x998] sm:$0xff]
  %v333 = vld [vmem:[%s2 + $0x9a0] sm:$0xff]
  %v334 = vld [vmem:[%s2 + $0x9a8] sm:$0xff]
  %v335 = vld [vmem:[%s2 + $0x9b0] sm:$0xff]
  %v336 = vld [vmem:[%s2 + $0x9b8] sm:$0xff]
  %v337 = vld [vmem:[%s2 + $0x9c0] sm:$0xff]
  %v338 = vld [vmem:[%s2 + $0x9c8] sm:$0xff]
  %v339 = vld [vmem:[%s2 + $0x9d0] sm:$0xff]
  %v340 = vld [vmem:[%s2 + $0x9d8] sm:$0xff]
  %v341 = vld [vmem:[%s2 + $0x9e0] sm:$0xff]
  %v342 = vld [vmem:[%s2 + $0x9e8] sm:$0xff]
  %v343 = vld [vmem:[%s2 + $0x9f0] sm:$0xff]
  %v344 = vld [vmem:[%s2 + $0x9f8] sm:$0xff]
  %v345 = vld [vmem:[%s2 + $0xa00] sm:$0xff]
  %v346 = vld [vmem:[%s2 + $0xa08] sm:$0xff]
  %v347 = vld [vmem:[%s2 + $0xa10] sm:$0xff]
  %v348 = vld [vmem:[%s2 + $0xa18] sm:$0xff]
  %v349 = vld [vmem:[%s2 + $0xa20] sm:$0xff]
  %v350 = vld [vmem:[%s2 + $0xa28] sm:$0xff]
  %v351 = vld [vmem:[%s2 + $0xa30] sm:$0xff]
  %v352 = vld [vmem:[%s2 + $0xa38] sm:$0xff]
  %v353 = vld [vmem:[%s2 + $0xa40] sm:$0xff]
  %v354 = vld [vmem:[%s2 + $0xa48] sm:$0xff]
  %v355 = vld [vmem:[%s2 + $0xa50] sm:$0xff]
  %v356 = vld [vmem:[%s2 + $0xa58] sm:$0xff]
  %v357 = vld [vmem:[%s2 + $0xa60] sm:$0xff]
  %v358 = vld [vmem:[%s2 + $0xa68] sm:$0xff]
  %v359 = vld [vmem:[%s2 + $0xa70] sm:$0xff]
  %v360 = vld [vmem:[%s2 + $0xa78] sm:$0xff]
  %v361 = vld [vmem:[%s2 + $0xa80] sm:$0xff]
  %v362 = vld [vmem:[%s2 + $0xa88] sm:$0xff]
  %v363 = vld [vmem:[%s2 + $0xa90] sm:$0xff]
  %v364 = vld [vmem:[%s2 + $0xa98] sm:$0xff]
  %v365 = vld [vmem:[%s2 + $0xaa0] sm:$0xff]
  %v366 = vld [vmem:[%s2 + $0xaa8] sm:$0xff]
  %v367 = vld [vmem:[%s2 + $0xab0] sm:$0xff]
  %v368 = vld [vmem:[%s2 + $0xab8] sm:$0xff]
  %v369 = vld [vmem:[%s2 + $0xac0] sm:$0xff]
  %v370 = vld [vmem:[%s2 + $0xac8] sm:$0xff]
  %v371 = vld [vmem:[%s2 + $0xad0] sm:$0xff]
  %v372 = vld [vmem:[%s2 + $0xad8] sm:$0xff]
  %v373 = vld [vmem:[%s2 + $0xae0] sm:$0xff]
  %v374 = vld [vmem:[%s2 + $0xae8] sm:$0xff]
  %v375 = vld [vmem:[%s2 + $0xaf0] sm:$0xff]
  %v376 = vld [vmem:[%s2 + $0xaf8] sm:$0xff]
  %v377 = vld [vmem:[%s2 + $0xb00] sm:$0xff]
  %v378 = vld [vmem:[%s2 + $0xb08] sm:$0xff]
  %v379 = vld [vmem:[%s2 + $0xb10] sm:$0xff]
  %v380 = vld [vmem:[%s2 + $0xb18] sm:$0xff]
  %v381 = vld [vmem:[%s2 + $0xb20] sm:$0xff]
  %v382 = vld [vmem:[%s2 + $0xb28] sm:$0xff]
  %v383 = vld [vmem:[%s2 + $0xb30] sm:$0xff]
  %v384 = vld [vmem:[%s2 + $0xb38] sm:$0xff]
  %v385 = vld [vmem:[%s2 + $0xb40] sm:$0xff]
  %v386 = vld [vmem:[%s2 + $0xb48] sm:$0xff]
  %v387 = vld [vmem:[%s2 + $0xb50] sm:$0xff]
  %v388 = vld [vmem:[%s2 + $0xb58] sm:$0xff]
  %v389 = vld [vmem:[%s2 + $0xb60] sm:$0xff]
  %v390 = vld [vmem:[%s2 + $0xb68] sm:$0xff]
  %v391 = vld [vmem:[%s2 + $0xb70] sm:$0xff]
  %v392 = vld [vmem:[%s2 + $0xb78] sm:$0xff]
  %v393 = vld [vmem:[%s2 + $0xb80] sm:$0xff]
  %v394 = vld [vmem:[%s2 + $0xb88] sm:$0xff]
  %v395 = vld [vmem:[%s2 + $0xb90] sm:$0xff]
  %v396 = vld [vmem:[%s2 + $0xb98] sm:$0xff]
  %v397 = vld [vmem:[%s2 + $0xba0] sm:$0xff]
  %v398 = vld [vmem:[%s2 + $0xba8] sm:$0xff]
  %v399 = vld [vmem:[%s2 + $0xbb0] sm:$0xff]
  %v400 = vld [vmem:[%s2 + $0xbb8] sm:$0xff]
  %v401 = vld [vmem:[%s2 + $0xbc0] sm:$0xff]
  %v402 = vld [vmem:[%s2 + $0xbc8] sm:$0xff]
  %vm403 = vcmask 130048
  %v405 = vsel %vm403, %v24, 0
  %407 = vmatprep.subr.mxu0 %v26
  %408 = vmatpush1.msra.mxu0 %v25
  %409 = vmatprep.subr.mxu0 %v47
  %410 = vmatpush1.msra.mxu0 %v46
  %411 = vmatprep.subr.mxu0 %v68
  %412 = vmatpush1.msra.mxu0 %v67
  %413 = vmatprep.subr.mxu0 %v89
  %414 = vmatpush1.msra.mxu0 %v88
  %415 = vmatprep.subr.mxu0 %v110
  %416 = vmatpush1.msra.mxu0 %v109
  %417 = vmatprep.subr.mxu0 %v131
  %418 = vmatpush1.msra.mxu0 %v130
  %419 = vmatprep.subr.mxu0 %v152
  %420 = vmatpush1.msra.mxu0 %v151
  %421 = vmatprep.subr.mxu0 %v173
  %422 = vmatpush1.msra.mxu0 %v172
  %423 = vmatprep.subr.mxu0 %v194
  %424 = vmatpush1.msra.mxu0 %v193
  %425 = vmatprep.subr.mxu0 %v215
  %426 = vmatpush1.msra.mxu0 %v214
  %427 = vmatprep.subr.mxu0 %v236
  %428 = vmatpush1.msra.mxu0 %v235
  %429 = vmatprep.subr.mxu0 %v257
  %430 = vmatpush1.msra.mxu0 %v256
  %431 = vmatprep.subr.mxu0 %v278
  %432 = vmatpush1.msra.mxu0 %v277
  %433 = vmatprep.subr.mxu0 %v299
  %434 = vmatpush1.msra.mxu0 %v298
  %435 = vmatprep.subr.mxu0 %v320
  %436 = vmatpush1.msra.mxu0 %v319
  %437 = vmatprep.subr.mxu0 %v341
  %438 = vmatpush1.msra.mxu0 %v340
  %439 = vmatprep.subr.mxu0 %v362
  %440 = vmatpush1.msra.mxu0 %v361
  %441 = vmatprep.subr.mxu0 %v383
  %442 = vmatpush1.msra.mxu0 %v382
  %443 = vmatprep.subr.mxu0 0.0
  %444 = vmatpush1.msra.mxu0 0.0
  %445 = vmatprep.subr.mxu0 0.0
  %446 = vmatpush1.msra.mxu0 0.0
  %447 = vmatprep.subr.mxu0 0.0
  %448 = vmatpush1.msra.mxu0 0.0
  %449 = vmatprep.subr.mxu0 0.0
  %450 = vmatpush1.msra.mxu0 0.0
  %451 = vmatprep.subr.mxu0 0.0
  %452 = vmatpush1.msra.mxu0 0.0
  %453 = vmatprep.subr.mxu0 0.0
  %454 = vmatpush1.msra.mxu0 0.0
  %455 = vmatprep.subr.mxu0 0.0
  %456 = vmatpush1.msra.mxu0 0.0
  %457 = vmatprep.subr.mxu0 0.0
  %458 = vmatpush1.msra.mxu0 0.0
  %459 = vmatprep.subr.mxu0 0.0
  %460 = vmatpush1.msra.mxu0 0.0
  %461 = vmatprep.subr.mxu0 0.0
  %462 = vmatpush1.msra.mxu0 0.0
  %463 = vmatprep.subr.mxu0 0.0
  %464 = vmatpush1.msra.mxu0 0.0
  %465 = vmatprep.subr.mxu0 0.0
  %466 = vmatpush1.msra.mxu0 0.0
  %467 = vmatprep.subr.mxu0 0.0
  %468 = vmatpush1.msra.mxu0 0.0
  %469 = vmatprep.subr.mxu0 0.0
  %470 = vmatpush1.msra.mxu0 0.0
  %471 = vmatprep.mubr.f32.mxu0 %v405
  %472 = vmatmul.mubr.f32.gmra.mrb[0].mxu0 %v23
  %v473 = vpop.f32.mrb[0].mxu0
  %v474 = vadd.f32 0.0, %v473
  %v475 = vpop.f32.mrb[0].mxu0
  %v476 = vadd.f32 0.0, %v475
  %477 = vdwg.mxu0
  %478 = vmatprep.subr.mxu0 %v28
  %479 = vmatpush1.msra.mxu0 %v27
  %480 = vmatprep.subr.mxu0 %v49
  %481 = vmatpush1.msra.mxu0 %v48
  %482 = vmatprep.subr.mxu0 %v70
  %483 = vmatpush1.msra.mxu0 %v69
  %484 = vmatprep.subr.mxu0 %v91
  %485 = vmatpush1.msra.mxu0 %v90
  %486 = vmatprep.subr.mxu0 %v112
  %487 = vmatpush1.msra.mxu0 %v111
  %488 = vmatprep.subr.mxu0 %v133
  %489 = vmatpush1.msra.mxu0 %v132
  %490 = vmatprep.subr.mxu0 %v154
  %491 = vmatpush1.msra.mxu0 %v153
  %492 = vmatprep.subr.mxu0 %v175
  %493 = vmatpush1.msra.mxu0 %v174
  %494 = vmatprep.subr.mxu0 %v196
  %495 = vmatpush1.msra.mxu0 %v195
  %496 = vmatprep.subr.mxu0 %v217
  %497 = vmatpush1.msra.mxu0 %v216
  %498 = vmatprep.subr.mxu0 %v238
  %499 = vmatpush1.msra.mxu0 %v237
  %500 = vmatprep.subr.mxu0 %v259
  %501 = vmatpush1.msra.mxu0 %v258
  %502 = vmatprep.subr.mxu0 %v280
  %503 = vmatpush1.msra.mxu0 %v279
  %504 = vmatprep.subr.mxu0 %v301
  %505 = vmatpush1.msra.mxu0 %v300
  %506 = vmatprep.subr.mxu0 %v322
  %507 = vmatpush1.msra.mxu0 %v321
  %508 = vmatprep.subr.mxu0 %v343
  %509 = vmatpush1.msra.mxu0 %v342
  %510 = vmatprep.subr.mxu0 %v364
  %511 = vmatpush1.msra.mxu0 %v363
  %512 = vmatprep.subr.mxu0 %v385
  %513 = vmatpush1.msra.mxu0 %v384
  %514 = vmatprep.subr.mxu0 0.0
  %515 = vmatpush1.msra.mxu0 0.0
  %516 = vmatprep.subr.mxu0 0.0
  %517 = vmatpush1.msra.mxu0 0.0
  %518 = vmatprep.subr.mxu0 0.0
  %519 = vmatpush1.msra.mxu0 0.0
  %520 = vmatprep.subr.mxu0 0.0
  %521 = vmatpush1.msra.mxu0 0.0
  %522 = vmatprep.subr.mxu0 0.0
  %523 = vmatpush1.msra.mxu0 0.0
  %524 = vmatprep.subr.mxu0 0.0
  %525 = vmatpush1.msra.mxu0 0.0
  %526 = vmatprep.subr.mxu0 0.0
  %527 = vmatpush1.msra.mxu0 0.0
  %528 = vmatprep.subr.mxu0 0.0
  %529 = vmatpush1.msra.mxu0 0.0
  %530 = vmatprep.subr.mxu0 0.0
  %531 = vmatpush1.msra.mxu0 0.0
  %532 = vmatprep.subr.mxu0 0.0
  %533 = vmatpush1.msra.mxu0 0.0
  %534 = vmatprep.subr.mxu0 0.0
  %535 = vmatpush1.msra.mxu0 0.0
  %536 = vmatprep.subr.mxu0 0.0
  %537 = vmatpush1.msra.mxu0 0.0
  %538 = vmatprep.subr.mxu0 0.0
  %539 = vmatpush1.msra.mxu0 0.0
  %540 = vmatprep.subr.mxu0 0.0
  %541 = vmatpush1.msra.mxu0 0.0
  %542 = vmatprep.mubr.f32.mxu0 %v405
  %543 = vmatmul.mubr.f32.gmra.mrb[0].mxu0 %v23
  %v544 = vpop.f32.mrb[0].mxu0
  %v545 = vadd.f32 0.0, %v544
  %v546 = vpop.f32.mrb[0].mxu0
  %v547 = vadd.f32 0.0, %v546
  %548 = vdwg.mxu0
  %549 = vmatprep.subr.mxu0 %v30
  %550 = vmatpush1.msra.mxu0 %v29
  %551 = vmatprep.subr.mxu0 %v51
  %552 = vmatpush1.msra.mxu0 %v50
  %553 = vmatprep.subr.mxu0 %v72
  %554 = vmatpush1.msra.mxu0 %v71
  %555 = vmatprep.subr.mxu0 %v93
  %556 = vmatpush1.msra.mxu0 %v92
  %557 = vmatprep.subr.mxu0 %v114
  %558 = vmatpush1.msra.mxu0 %v113
  %559 = vmatprep.subr.mxu0 %v135
  %560 = vmatpush1.msra.mxu0 %v134
  %561 = vmatprep.subr.mxu0 %v156
  %562 = vmatpush1.msra.mxu0 %v155
  %563 = vmatprep.subr.mxu0 %v177
  %564 = vmatpush1.msra.mxu0 %v176
  %565 = vmatprep.subr.mxu0 %v198
  %566 = vmatpush1.msra.mxu0 %v197
  %567 = vmatprep.subr.mxu0 %v219
  %568 = vmatpush1.msra.mxu0 %v218
  %569 = vmatprep.subr.mxu0 %v240
  %570 = vmatpush1.msra.mxu0 %v239
  %571 = vmatprep.subr.mxu0 %v261
  %572 = vmatpush1.msra.mxu0 %v260
  %573 = vmatprep.subr.mxu0 %v282
  %574 = vmatpush1.msra.mxu0 %v281
  %575 = vmatprep.subr.mxu0 %v303
  %576 = vmatpush1.msra.mxu0 %v302
  %577 = vmatprep.subr.mxu0 %v324
  %578 = vmatpush1.msra.mxu0 %v323
  %579 = vmatprep.subr.mxu0 %v345
  %580 = vmatpush1.msra.mxu0 %v344
  %581 = vmatprep.subr.mxu0 %v366
  %582 = vmatpush1.msra.mxu0 %v365
  %583 = vmatprep.subr.mxu0 %v387
  %584 = vmatpush1.msra.mxu0 %v386
  %585 = vmatprep.subr.mxu0 0.0
  %586 = vmatpush1.msra.mxu0 0.0
  %587 = vmatprep.subr.mxu0 0.0
  %588 = vmatpush1.msra.mxu0 0.0
  %589 = vmatprep.subr.mxu0 0.0
  %590 = vmatpush1.msra.mxu0 0.0
  %591 = vmatprep.subr.mxu0 0.0
  %592 = vmatpush1.msra.mxu0 0.0
  %593 = vmatprep.subr.mxu0 0.0
  %594 = vmatpush1.msra.mxu0 0.0
  %595 = vmatprep.subr.mxu0 0.0
  %596 = vmatpush1.msra.mxu0 0.0
  %597 = vmatprep.subr.mxu0 0.0
  %598 = vmatpush1.msra.mxu0 0.0
  %599 = vmatprep.subr.mxu0 0.0
  %600 = vmatpush1.msra.mxu0 0.0
  %601 = vmatprep.subr.mxu0 0.0
  %602 = vmatpush1.msra.mxu0 0.0
  %603 = vmatprep.subr.mxu0 0.0
  %604 = vmatpush1.msra.mxu0 0.0
  %605 = vmatprep.subr.mxu0 0.0
  %606 = vmatpush1.msra.mxu0 0.0
  %607 = vmatprep.subr.mxu0 0.0
  %608 = vmatpush1.msra.mxu0 0.0
  %609 = vmatprep.subr.mxu0 0.0
  %610 = vmatpush1.msra.mxu0 0.0
  %611 = vmatprep.subr.mxu0 0.0
  %612 = vmatpush1.msra.mxu0 0.0
  %613 = vmatprep.mubr.f32.mxu0 %v405
  %614 = vmatmul.mubr.f32.gmra.mrb[0].mxu0 %v23
  %v615 = vpop.f32.mrb[0].mxu0
  %v616 = vadd.f32 0.0, %v615
  %v617 = vpop.f32.mrb[0].mxu0
  %v618 = vadd.f32 0.0, %v617
  %619 = vdwg.mxu0
  %620 = vmatprep.subr.mxu0 %v32
  %621 = vmatpush1.msra.mxu0 %v31
  %622 = vmatprep.subr.mxu0 %v53
  %623 = vmatpush1.msra.mxu0 %v52
  %624 = vmatprep.subr.mxu0 %v74
  %625 = vmatpush1.msra.mxu0 %v73
  %626 = vmatprep.subr.mxu0 %v95
  %627 = vmatpush1.msra.mxu0 %v94
  %628 = vmatprep.subr.mxu0 %v116
  %629 = vmatpush1.msra.mxu0 %v115
  %630 = vmatprep.subr.mxu0 %v137
  %631 = vmatpush1.msra.mxu0 %v136
  %632 = vmatprep.subr.mxu0 %v158
  %633 = vmatpush1.msra.mxu0 %v157
  %634 = vmatprep.subr.mxu0 %v179
  %635 = vmatpush1.msra.mxu0 %v178
  %636 = vmatprep.subr.mxu0 %v200
  %637 = vmatpush1.msra.mxu0 %v199
  %638 = vmatprep.subr.mxu0 %v221
  %639 = vmatpush1.msra.mxu0 %v220
  %640 = vmatprep.subr.mxu0 %v242
  %641 = vmatpush1.msra.mxu0 %v241
  %642 = vmatprep.subr.mxu0 %v263
  %643 = vmatpush1.msra.mxu0 %v262
  %644 = vmatprep.subr.mxu0 %v284
  %645 = vmatpush1.msra.mxu0 %v283
  %646 = vmatprep.subr.mxu0 %v305
  %647 = vmatpush1.msra.mxu0 %v304
  %648 = vmatprep.subr.mxu0 %v326
  %649 = vmatpush1.msra.mxu0 %v325
  %650 = vmatprep.subr.mxu0 %v347
  %651 = vmatpush1.msra.mxu0 %v346
  %652 = vmatprep.subr.mxu0 %v368
  %653 = vmatpush1.msra.mxu0 %v367
  %654 = vmatprep.subr.mxu0 %v389
  %655 = vmatpush1.msra.mxu0 %v388
  %656 = vmatprep.subr.mxu0 0.0
  %657 = vmatpush1.msra.mxu0 0.0
  %658 = vmatprep.subr.mxu0 0.0
  %659 = vmatpush1.msra.mxu0 0.0
  %660 = vmatprep.subr.mxu0 0.0
  %661 = vmatpush1.msra.mxu0 0.0
  %662 = vmatprep.subr.mxu0 0.0
  %663 = vmatpush1.msra.mxu0 0.0
  %664 = vmatprep.subr.mxu0 0.0
  %665 = vmatpush1.msra.mxu0 0.0
  %666 = vmatprep.subr.mxu0 0.0
  %667 = vmatpush1.msra.mxu0 0.0
  %668 = vmatprep.subr.mxu0 0.0
  %669 = vmatpush1.msra.mxu0 0.0
  %670 = vmatprep.subr.mxu0 0.0
  %671 = vmatpush1.msra.mxu0 0.0
  %672 = vmatprep.subr.mxu0 0.0
  %673 = vmatpush1.msra.mxu0 0.0
  %674 = vmatprep.subr.mxu0 0.0
  %675 = vmatpush1.msra.mxu0 0.0
  %676 = vmatprep.subr.mxu0 0.0
  %677 = vmatpush1.msra.mxu0 0.0
  %678 = vmatprep.subr.mxu0 0.0
  %679 = vmatpush1.msra.mxu0 0.0
  %680 = vmatprep.subr.mxu0 0.0
  %681 = vmatpush1.msra.mxu0 0.0
  %682 = vmatprep.subr.mxu0 0.0
  %683 = vmatpush1.msra.mxu0 0.0
  %684 = vmatprep.mubr.f32.mxu0 %v405
  %685 = vmatmul.mubr.f32.gmra.mrb[0].mxu0 %v23
  %v686 = vpop.f32.mrb[0].mxu0
  %v687 = vadd.f32 0.0, %v686
  %v688 = vpop.f32.mrb[0].mxu0
  %v689 = vadd.f32 0.0, %v688
  %690 = vdwg.mxu0
  %691 = vmatprep.subr.mxu0 %v34
  %692 = vmatpush1.msra.mxu0 %v33
  %693 = vmatprep.subr.mxu0 %v55
  %694 = vmatpush1.msra.mxu0 %v54
  %695 = vmatprep.subr.mxu0 %v76
  %696 = vmatpush1.msra.mxu0 %v75
  %697 = vmatprep.subr.mxu0 %v97
  %698 = vmatpush1.msra.mxu0 %v96
  %699 = vmatprep.subr.mxu0 %v118
  %700 = vmatpush1.msra.mxu0 %v117
  %701 = vmatprep.subr.mxu0 %v139
  %702 = vmatpush1.msra.mxu0 %v138
  %703 = vmatprep.subr.mxu0 %v160
  %704 = vmatpush1.msra.mxu0 %v159
  %705 = vmatprep.subr.mxu0 %v181
  %706 = vmatpush1.msra.mxu0 %v180
  %707 = vmatprep.subr.mxu0 %v202
  %708 = vmatpush1.msra.mxu0 %v201
  %709 = vmatprep.subr.mxu0 %v223
  %710 = vmatpush1.msra.mxu0 %v222
  %711 = vmatprep.subr.mxu0 %v244
  %712 = vmatpush1.msra.mxu0 %v243
  %713 = vmatprep.subr.mxu0 %v265
  %714 = vmatpush1.msra.mxu0 %v264
  %715 = vmatprep.subr.mxu0 %v286
  %716 = vmatpush1.msra.mxu0 %v285
  %717 = vmatprep.subr.mxu0 %v307
  %718 = vmatpush1.msra.mxu0 %v306
  %719 = vmatprep.subr.mxu0 %v328
  %720 = vmatpush1.msra.mxu0 %v327
  %721 = vmatprep.subr.mxu0 %v349
  %722 = vmatpush1.msra.mxu0 %v348
  %723 = vmatprep.subr.mxu0 %v370
  %724 = vmatpush1.msra.mxu0 %v369
  %725 = vmatprep.subr.mxu0 %v391
  %726 = vmatpush1.msra.mxu0 %v390
  %727 = vmatprep.subr.mxu0 0.0
  %728 = vmatpush1.msra.mxu0 0.0
  %729 = vmatprep.subr.mxu0 0.0
  %730 = vmatpush1.msra.mxu0 0.0
  %731 = vmatprep.subr.mxu0 0.0
  %732 = vmatpush1.msra.mxu0 0.0
  %733 = vmatprep.subr.mxu0 0.0
  %734 = vmatpush1.msra.mxu0 0.0
  %735 = vmatprep.subr.mxu0 0.0
  %736 = vmatpush1.msra.mxu0 0.0
  %737 = vmatprep.subr.mxu0 0.0
  %738 = vmatpush1.msra.mxu0 0.0
  %739 = vmatprep.subr.mxu0 0.0
  %740 = vmatpush1.msra.mxu0 0.0
  %741 = vmatprep.subr.mxu0 0.0
  %742 = vmatpush1.msra.mxu0 0.0
  %743 = vmatprep.subr.mxu0 0.0
  %744 = vmatpush1.msra.mxu0 0.0
  %745 = vmatprep.subr.mxu0 0.0
  %746 = vmatpush1.msra.mxu0 0.0
  %747 = vmatprep.subr.mxu0 0.0
  %748 = vmatpush1.msra.mxu0 0.0
  %749 = vmatprep.subr.mxu0 0.0
  %750 = vmatpush1.msra.mxu0 0.0
  %751 = vmatprep.subr.mxu0 0.0
  %752 = vmatpush1.msra.mxu0 0.0
  %753 = vmatprep.subr.mxu0 0.0
  %754 = vmatpush1.msra.mxu0 0.0
  %755 = vmatprep.mubr.f32.mxu0 %v405
  %756 = vmatmul.mubr.f32.gmra.mrb[0].mxu0 %v23
  %v757 = vpop.f32.mrb[0].mxu0
  %v758 = vadd.f32 0.0, %v757
  %v759 = vpop.f32.mrb[0].mxu0
  %v760 = vadd.f32 0.0, %v759
  %761 = vdwg.mxu0
  %762 = vmatprep.subr.mxu0 %v36
  %763 = vmatpush1.msra.mxu0 %v35
  %764 = vmatprep.subr.mxu0 %v57
  %765 = vmatpush1.msra.mxu0 %v56
  %766 = vmatprep.subr.mxu0 %v78
  %767 = vmatpush1.msra.mxu0 %v77
  %768 = vmatprep.subr.mxu0 %v99
  %769 = vmatpush1.msra.mxu0 %v98
  %770 = vmatprep.subr.mxu0 %v120
  %771 = vmatpush1.msra.mxu0 %v119
  %772 = vmatprep.subr.mxu0 %v141
  %773 = vmatpush1.msra.mxu0 %v140
  %774 = vmatprep.subr.mxu0 %v162
  %775 = vmatpush1.msra.mxu0 %v161
  %776 = vmatprep.subr.mxu0 %v183
  %777 = vmatpush1.msra.mxu0 %v182
  %778 = vmatprep.subr.mxu0 %v204
  %779 = vmatpush1.msra.mxu0 %v203
  %780 = vmatprep.subr.mxu0 %v225
  %781 = vmatpush1.msra.mxu0 %v224
  %782 = vmatprep.subr.mxu0 %v246
  %783 = vmatpush1.msra.mxu0 %v245
  %784 = vmatprep.subr.mxu0 %v267
  %785 = vmatpush1.msra.mxu0 %v266
  %786 = vmatprep.subr.mxu0 %v288
  %787 = vmatpush1.msra.mxu0 %v287
  %788 = vmatprep.subr.mxu0 %v309
  %789 = vmatpush1.msra.mxu0 %v308
  %790 = vmatprep.subr.mxu0 %v330
  %791 = vmatpush1.msra.mxu0 %v329
  %792 = vmatprep.subr.mxu0 %v351
  %793 = vmatpush1.msra.mxu0 %v350
  %794 = vmatprep.subr.mxu0 %v372
  %795 = vmatpush1.msra.mxu0 %v371
  %796 = vmatprep.subr.mxu0 %v393
  %797 = vmatpush1.msra.mxu0 %v392
  %798 = vmatprep.subr.mxu0 0.0
  %799 = vmatpush1.msra.mxu0 0.0
  %800 = vmatprep.subr.mxu0 0.0
  %801 = vmatpush1.msra.mxu0 0.0
  %802 = vmatprep.subr.mxu0 0.0
  %803 = vmatpush1.msra.mxu0 0.0
  %804 = vmatprep.subr.mxu0 0.0
  %805 = vmatpush1.msra.mxu0 0.0
  %806 = vmatprep.subr.mxu0 0.0
  %807 = vmatpush1.msra.mxu0 0.0
  %808 = vmatprep.subr.mxu0 0.0
  %809 = vmatpush1.msra.mxu0 0.0
  %810 = vmatprep.subr.mxu0 0.0
  %811 = vmatpush1.msra.mxu0 0.0
  %812 = vmatprep.subr.mxu0 0.0
  %813 = vmatpush1.msra.mxu0 0.0
  %814 = vmatprep.subr.mxu0 0.0
  %815 = vmatpush1.msra.mxu0 0.0
  %816 = vmatprep.subr.mxu0 0.0
  %817 = vmatpush1.msra.mxu0 0.0
  %818 = vmatprep.subr.mxu0 0.0
  %819 = vmatpush1.msra.mxu0 0.0
  %820 = vmatprep.subr.mxu0 0.0
  %821 = vmatpush1.msra.mxu0 0.0
  %822 = vmatprep.subr.mxu0 0.0
  %823 = vmatpush1.msra.mxu0 0.0
  %824 = vmatprep.subr.mxu0 0.0
  %825 = vmatpush1.msra.mxu0 0.0
  %826 = vmatprep.mubr.f32.mxu0 %v405
  %827 = vmatmul.mubr.f32.gmra.mrb[0].mxu0 %v23
  %v828 = vpop.f32.mrb[0].mxu0
  %v829 = vadd.f32 0.0, %v828
  %v830 = vpop.f32.mrb[0].mxu0
  %v831 = vadd.f32 0.0, %v830
  %832 = vdwg.mxu0
  %833 = vmatprep.subr.mxu0 %v38
  %834 = vmatpush1.msra.mxu0 %v37
  %835 = vmatprep.subr.mxu0 %v59
  %836 = vmatpush1.msra.mxu0 %v58
  %837 = vmatprep.subr.mxu0 %v80
  %838 = vmatpush1.msra.mxu0 %v79
  %839 = vmatprep.subr.mxu0 %v101
  %840 = vmatpush1.msra.mxu0 %v100
  %841 = vmatprep.subr.mxu0 %v122
  %842 = vmatpush1.msra.mxu0 %v121
  %843 = vmatprep.subr.mxu0 %v143
  %844 = vmatpush1.msra.mxu0 %v142
  %845 = vmatprep.subr.mxu0 %v164
  %846 = vmatpush1.msra.mxu0 %v163
  %847 = vmatprep.subr.mxu0 %v185
  %848 = vmatpush1.msra.mxu0 %v184
  %849 = vmatprep.subr.mxu0 %v206
  %850 = vmatpush1.msra.mxu0 %v205
  %851 = vmatprep.subr.mxu0 %v227
  %852 = vmatpush1.msra.mxu0 %v226
  %853 = vmatprep.subr.mxu0 %v248
  %854 = vmatpush1.msra.mxu0 %v247
  %855 = vmatprep.subr.mxu0 %v269
  %856 = vmatpush1.msra.mxu0 %v268
  %857 = vmatprep.subr.mxu0 %v290
  %858 = vmatpush1.msra.mxu0 %v289
  %859 = vmatprep.subr.mxu0 %v311
  %860 = vmatpush1.msra.mxu0 %v310
  %861 = vmatprep.subr.mxu0 %v332
  %862 = vmatpush1.msra.mxu0 %v331
  %863 = vmatprep.subr.mxu0 %v353
  %864 = vmatpush1.msra.mxu0 %v352
  %865 = vmatprep.subr.mxu0 %v374
  %866 = vmatpush1.msra.mxu0 %v373
  %867 = vmatprep.subr.mxu0 %v395
  %868 = vmatpush1.msra.mxu0 %v394
  %869 = vmatprep.subr.mxu0 0.0
  %870 = vmatpush1.msra.mxu0 0.0
  %871 = vmatprep.subr.mxu0 0.0
  %872 = vmatpush1.msra.mxu0 0.0
  %873 = vmatprep.subr.mxu0 0.0
  %874 = vmatpush1.msra.mxu0 0.0
  %875 = vmatprep.subr.mxu0 0.0
  %876 = vmatpush1.msra.mxu0 0.0
  %877 = vmatprep.subr.mxu0 0.0
  %878 = vmatpush1.msra.mxu0 0.0
  %879 = vmatprep.subr.mxu0 0.0
  %880 = vmatpush1.msra.mxu0 0.0
  %881 = vmatprep.subr.mxu0 0.0
  %882 = vmatpush1.msra.mxu0 0.0
  %883 = vmatprep.subr.mxu0 0.0
  %884 = vmatpush1.msra.mxu0 0.0
  %885 = vmatprep.subr.mxu0 0.0
  %886 = vmatpush1.msra.mxu0 0.0
  %887 = vmatprep.subr.mxu0 0.0
  %888 = vmatpush1.msra.mxu0 0.0
  %889 = vmatprep.subr.mxu0 0.0
  %890 = vmatpush1.msra.mxu0 0.0
  %891 = vmatprep.subr.mxu0 0.0
  %892 = vmatpush1.msra.mxu0 0.0
  %893 = vmatprep.subr.mxu0 0.0
  %894 = vmatpush1.msra.mxu0 0.0
  %895 = vmatprep.subr.mxu0 0.0
  %896 = vmatpush1.msra.mxu0 0.0
  %897 = vmatprep.mubr.f32.mxu0 %v405
  %898 = vmatmul.mubr.f32.gmra.mrb[0].mxu0 %v23
  %v899 = vpop.f32.mrb[0].mxu0
  %v900 = vadd.f32 0.0, %v899
  %v901 = vpop.f32.mrb[0].mxu0
  %v902 = vadd.f32 0.0, %v901
  %903 = vdwg.mxu0
  %904 = vmatprep.subr.mxu0 %v40
  %905 = vmatpush1.msra.mxu0 %v39
  %906 = vmatprep.subr.mxu0 %v61
  %907 = vmatpush1.msra.mxu0 %v60
  %908 = vmatprep.subr.mxu0 %v82
  %909 = vmatpush1.msra.mxu0 %v81
  %910 = vmatprep.subr.mxu0 %v103
  %911 = vmatpush1.msra.mxu0 %v102
  %912 = vmatprep.subr.mxu0 %v124
  %913 = vmatpush1.msra.mxu0 %v123
  %914 = vmatprep.subr.mxu0 %v145
  %915 = vmatpush1.msra.mxu0 %v144
  %916 = vmatprep.subr.mxu0 %v166
  %917 = vmatpush1.msra.mxu0 %v165
  %918 = vmatprep.subr.mxu0 %v187
  %919 = vmatpush1.msra.mxu0 %v186
  %920 = vmatprep.subr.mxu0 %v208
  %921 = vmatpush1.msra.mxu0 %v207
  %922 = vmatprep.subr.mxu0 %v229
  %923 = vmatpush1.msra.mxu0 %v228
  %924 = vmatprep.subr.mxu0 %v250
  %925 = vmatpush1.msra.mxu0 %v249
  %926 = vmatprep.subr.mxu0 %v271
  %927 = vmatpush1.msra.mxu0 %v270
  %928 = vmatprep.subr.mxu0 %v292
  %929 = vmatpush1.msra.mxu0 %v291
  %930 = vmatprep.subr.mxu0 %v313
  %931 = vmatpush1.msra.mxu0 %v312
  %932 = vmatprep.subr.mxu0 %v334
  %933 = vmatpush1.msra.mxu0 %v333
  %934 = vmatprep.subr.mxu0 %v355
  %935 = vmatpush1.msra.mxu0 %v354
  %936 = vmatprep.subr.mxu0 %v376
  %937 = vmatpush1.msra.mxu0 %v375
  %938 = vmatprep.subr.mxu0 %v397
  %939 = vmatpush1.msra.mxu0 %v396
  %940 = vmatprep.subr.mxu0 0.0
  %941 = vmatpush1.msra.mxu0 0.0
  %942 = vmatprep.subr.mxu0 0.0
  %943 = vmatpush1.msra.mxu0 0.0
  %944 = vmatprep.subr.mxu0 0.0
  %945 = vmatpush1.msra.mxu0 0.0
  %946 = vmatprep.subr.mxu0 0.0
  %947 = vmatpush1.msra.mxu0 0.0
  %948 = vmatprep.subr.mxu0 0.0
  %949 = vmatpush1.msra.mxu0 0.0
  %950 = vmatprep.subr.mxu0 0.0
  %951 = vmatpush1.msra.mxu0 0.0
  %952 = vmatprep.subr.mxu0 0.0
  %953 = vmatpush1.msra.mxu0 0.0
  %954 = vmatprep.subr.mxu0 0.0
  %955 = vmatpush1.msra.mxu0 0.0
  %956 = vmatprep.subr.mxu0 0.0
  %957 = vmatpush1.msra.mxu0 0.0
  %958 = vmatprep.subr.mxu0 0.0
  %959 = vmatpush1.msra.mxu0 0.0
  %960 = vmatprep.subr.mxu0 0.0
  %961 = vmatpush1.msra.mxu0 0.0
  %962 = vmatprep.subr.mxu0 0.0
  %963 = vmatpush1.msra.mxu0 0.0
  %964 = vmatprep.subr.mxu0 0.0
  %965 = vmatpush1.msra.mxu0 0.0
  %966 = vmatprep.subr.mxu0 0.0
  %967 = vmatpush1.msra.mxu0 0.0
  %968 = vmatprep.mubr.f32.mxu0 %v405
  %969 = vmatmul.mubr.f32.gmra.mrb[0].mxu0 %v23
  %v970 = vpop.f32.mrb[0].mxu0
  %v971 = vadd.f32 0.0, %v970
  %v972 = vpop.f32.mrb[0].mxu0
  %v973 = vadd.f32 0.0, %v972
  %974 = vdwg.mxu0
  %975 = vmatprep.subr.mxu0 %v42
  %976 = vmatpush1.msra.mxu0 %v41
  %977 = vmatprep.subr.mxu0 %v63
  %978 = vmatpush1.msra.mxu0 %v62
  %979 = vmatprep.subr.mxu0 %v84
  %980 = vmatpush1.msra.mxu0 %v83
  %981 = vmatprep.subr.mxu0 %v105
  %982 = vmatpush1.msra.mxu0 %v104
  %983 = vmatprep.subr.mxu0 %v126
  %984 = vmatpush1.msra.mxu0 %v125
  %985 = vmatprep.subr.mxu0 %v147
  %986 = vmatpush1.msra.mxu0 %v146
  %987 = vmatprep.subr.mxu0 %v168
  %988 = vmatpush1.msra.mxu0 %v167
  %989 = vmatprep.subr.mxu0 %v189
  %990 = vmatpush1.msra.mxu0 %v188
  %991 = vmatprep.subr.mxu0 %v210
  %992 = vmatpush1.msra.mxu0 %v209
  %993 = vmatprep.subr.mxu0 %v231
  %994 = vmatpush1.msra.mxu0 %v230
  %995 = vmatprep.subr.mxu0 %v252
  %996 = vmatpush1.msra.mxu0 %v251
  %997 = vmatprep.subr.mxu0 %v273
  %998 = vmatpush1.msra.mxu0 %v272
  %999 = vmatprep.subr.mxu0 %v294
  %1000 = vmatpush1.msra.mxu0 %v293
  %1001 = vmatprep.subr.mxu0 %v315
  %1002 = vmatpush1.msra.mxu0 %v314
  %1003 = vmatprep.subr.mxu0 %v336
  %1004 = vmatpush1.msra.mxu0 %v335
  %1005 = vmatprep.subr.mxu0 %v357
  %1006 = vmatpush1.msra.mxu0 %v356
  %1007 = vmatprep.subr.mxu0 %v378
  %1008 = vmatpush1.msra.mxu0 %v377
  %1009 = vmatprep.subr.mxu0 %v399
  %1010 = vmatpush1.msra.mxu0 %v398
  %1011 = vmatprep.subr.mxu0 0.0
  %1012 = vmatpush1.msra.mxu0 0.0
  %1013 = vmatprep.subr.mxu0 0.0
  %1014 = vmatpush1.msra.mxu0 0.0
  %1015 = vmatprep.subr.mxu0 0.0
  %1016 = vmatpush1.msra.mxu0 0.0
  %1017 = vmatprep.subr.mxu0 0.0
  %1018 = vmatpush1.msra.mxu0 0.0
  %1019 = vmatprep.subr.mxu0 0.0
  %1020 = vmatpush1.msra.mxu0 0.0
  %1021 = vmatprep.subr.mxu0 0.0
  %1022 = vmatpush1.msra.mxu0 0.0
  %1023 = vmatprep.subr.mxu0 0.0
  %1024 = vmatpush1.msra.mxu0 0.0
  %1025 = vmatprep.subr.mxu0 0.0
  %1026 = vmatpush1.msra.mxu0 0.0
  %1027 = vmatprep.subr.mxu0 0.0
  %1028 = vmatpush1.msra.mxu0 0.0
  %1029 = vmatprep.subr.mxu0 0.0
  %1030 = vmatpush1.msra.mxu0 0.0
  %1031 = vmatprep.subr.mxu0 0.0
  %1032 = vmatpush1.msra.mxu0 0.0
  %1033 = vmatprep.subr.mxu0 0.0
  %1034 = vmatpush1.msra.mxu0 0.0
  %1035 = vmatprep.subr.mxu0 0.0
  %1036 = vmatpush1.msra.mxu0 0.0
  %1037 = vmatprep.subr.mxu0 0.0
  %1038 = vmatpush1.msra.mxu0 0.0
  %1039 = vmatprep.mubr.f32.mxu0 %v405
  %1040 = vmatmul.mubr.f32.gmra.mrb[0].mxu0 %v23
  %v1041 = vpop.f32.mrb[0].mxu0
  %v1042 = vadd.f32 0.0, %v1041
  %v1043 = vpop.f32.mrb[0].mxu0
  %v1044 = vadd.f32 0.0, %v1043
  %1045 = vdwg.mxu0
  %1046 = vmatprep.subr.mxu0 %v44
  %1047 = vmatpush1.msra.mxu0 %v43
  %1048 = vmatprep.subr.mxu0 %v65
  %1049 = vmatpush1.msra.mxu0 %v64
  %1050 = vmatprep.subr.mxu0 %v86
  %1051 = vmatpush1.msra.mxu0 %v85
  %1052 = vmatprep.subr.mxu0 %v107
  %1053 = vmatpush1.msra.mxu0 %v106
  %1054 = vmatprep.subr.mxu0 %v128
  %1055 = vmatpush1.msra.mxu0 %v127
  %1056 = vmatprep.subr.mxu0 %v149
  %1057 = vmatpush1.msra.mxu0 %v148
  %1058 = vmatprep.subr.mxu0 %v170
  %1059 = vmatpush1.msra.mxu0 %v169
  %1060 = vmatprep.subr.mxu0 %v191
  %1061 = vmatpush1.msra.mxu0 %v190
  %1062 = vmatprep.subr.mxu0 %v212
  %1063 = vmatpush1.msra.mxu0 %v211
  %1064 = vmatprep.subr.mxu0 %v233
  %1065 = vmatpush1.msra.mxu0 %v232
  %1066 = vmatprep.subr.mxu0 %v254
  %1067 = vmatpush1.msra.mxu0 %v253
  %1068 = vmatprep.subr.mxu0 %v275
  %1069 = vmatpush1.msra.mxu0 %v274
  %1070 = vmatprep.subr.mxu0 %v296
  %1071 = vmatpush1.msra.mxu0 %v295
  %1072 = vmatprep.subr.mxu0 %v317
  %1073 = vmatpush1.msra.mxu0 %v316
  %1074 = vmatprep.subr.mxu0 %v338
  %1075 = vmatpush1.msra.mxu0 %v337
  %1076 = vmatprep.subr.mxu0 %v359
  %1077 = vmatpush1.msra.mxu0 %v358
  %1078 = vmatprep.subr.mxu0 %v380
  %1079 = vmatpush1.msra.mxu0 %v379
  %1080 = vmatprep.subr.mxu0 %v401
  %1081 = vmatpush1.msra.mxu0 %v400
  %1082 = vmatprep.subr.mxu0 0.0
  %1083 = vmatpush1.msra.mxu0 0.0
  %1084 = vmatprep.subr.mxu0 0.0
  %1085 = vmatpush1.msra.mxu0 0.0
  %1086 = vmatprep.subr.mxu0 0.0
  %1087 = vmatpush1.msra.mxu0 0.0
  %1088 = vmatprep.subr.mxu0 0.0
  %1089 = vmatpush1.msra.mxu0 0.0
  %1090 = vmatprep.subr.mxu0 0.0
  %1091 = vmatpush1.msra.mxu0 0.0
  %1092 = vmatprep.subr.mxu0 0.0
  %1093 = vmatpush1.msra.mxu0 0.0
  %1094 = vmatprep.subr.mxu0 0.0
  %1095 = vmatpush1.msra.mxu0 0.0
  %1096 = vmatprep.subr.mxu0 0.0
  %1097 = vmatpush1.msra.mxu0 0.0
  %1098 = vmatprep.subr.mxu0 0.0
  %1099 = vmatpush1.msra.mxu0 0.0
  %1100 = vmatprep.subr.mxu0 0.0
  %1101 = vmatpush1.msra.mxu0 0.0
  %1102 = vmatprep.subr.mxu0 0.0
  %1103 = vmatpush1.msra.mxu0 0.0
  %1104 = vmatprep.subr.mxu0 0.0
  %1105 = vmatpush1.msra.mxu0 0.0
  %1106 = vmatprep.subr.mxu0 0.0
  %1107 = vmatpush1.msra.mxu0 0.0
  %1108 = vmatprep.subr.mxu0 0.0
  %1109 = vmatpush1.msra.mxu0 0.0
  %1110 = vmatprep.mubr.f32.mxu0 %v405
  %1111 = vmatmul.mubr.f32.gmra.mrb[0].mxu0 %v23
  %v1112 = vpop.f32.mrb[0].mxu0
  %v1113 = vadd.f32 0.0, %v1112
  %v1114 = vpop.f32.mrb[0].mxu0
  %v1115 = vadd.f32 0.0, %v1114
  %1116 = vdwg.mxu0
  %1117 = vmatprep.subr.mxu0 0.0
  %1118 = vmatpush1.msra.mxu0 %v45
  %1119 = vmatprep.subr.mxu0 0.0
  %1120 = vmatpush1.msra.mxu0 %v66
  %1121 = vmatprep.subr.mxu0 0.0
  %1122 = vmatpush1.msra.mxu0 %v87
  %1123 = vmatprep.subr.mxu0 0.0
  %1124 = vmatpush1.msra.mxu0 %v108
  %1125 = vmatprep.subr.mxu0 0.0
  %1126 = vmatpush1.msra.mxu0 %v129
  %1127 = vmatprep.subr.mxu0 0.0
  %1128 = vmatpush1.msra.mxu0 %v150
  %1129 = vmatprep.subr.mxu0 0.0
  %1130 = vmatpush1.msra.mxu0 %v171
  %1131 = vmatprep.subr.mxu0 0.0
  %1132 = vmatpush1.msra.mxu0 %v192
  %1133 = vmatprep.subr.mxu0 0.0
  %1134 = vmatpush1.msra.mxu0 %v213
  %1135 = vmatprep.subr.mxu0 0.0
  %1136 = vmatpush1.msra.mxu0 %v234
  %1137 = vmatprep.subr.mxu0 0.0
  %1138 = vmatpush1.msra.mxu0 %v255
  %1139 = vmatprep.subr.mxu0 0.0
  %1140 = vmatpush1.msra.mxu0 %v276
  %1141 = vmatprep.subr.mxu0 0.0
  %1142 = vmatpush1.msra.mxu0 %v297
  %1143 = vmatprep.subr.mxu0 0.0
  %1144 = vmatpush1.msra.mxu0 %v318
  %1145 = vmatprep.subr.mxu0 0.0
  %1146 = vmatpush1.msra.mxu0 %v339
  %1147 = vmatprep.subr.mxu0 0.0
  %1148 = vmatpush1.msra.mxu0 %v360
  %1149 = vmatprep.subr.mxu0 0.0
  %1150 = vmatpush1.msra.mxu0 %v381
  %1151 = vmatprep.subr.mxu0 0.0
  %1152 = vmatpush1.msra.mxu0 %v402
  %1153 = vmatprep.subr.mxu0 0.0
  %1154 = vmatpush1.msra.mxu0 0.0
  %1155 = vmatprep.subr.mxu0 0.0
  %1156 = vmatpush1.msra.mxu0 0.0
  %1157 = vmatprep.subr.mxu0 0.0
  %1158 = vmatpush1.msra.mxu0 0.0
  %1159 = vmatprep.subr.mxu0 0.0
  %1160 = vmatpush1.msra.mxu0 0.0
  %1161 = vmatprep.subr.mxu0 0.0
  %1162 = vmatpush1.msra.mxu0 0.0
  %1163 = vmatprep.subr.mxu0 0.0
  %1164 = vmatpush1.msra.mxu0 0.0
  %1165 = vmatprep.subr.mxu0 0.0
  %1166 = vmatpush1.msra.mxu0 0.0
  %1167 = vmatprep.subr.mxu0 0.0
  %1168 = vmatpush1.msra.mxu0 0.0
  %1169 = vmatprep.subr.mxu0 0.0
  %1170 = vmatpush1.msra.mxu0 0.0
  %1171 = vmatprep.subr.mxu0 0.0
  %1172 = vmatpush1.msra.mxu0 0.0
  %1173 = vmatprep.subr.mxu0 0.0
  %1174 = vmatpush1.msra.mxu0 0.0
  %1175 = vmatprep.subr.mxu0 0.0
  %1176 = vmatpush1.msra.mxu0 0.0
  %1177 = vmatprep.subr.mxu0 0.0
  %1178 = vmatpush1.msra.mxu0 0.0
  %1179 = vmatprep.subr.mxu0 0.0
  %1180 = vmatpush1.msra.mxu0 0.0
  %1181 = vmatprep.mubr.f32.mxu0 %v405
  %1182 = vmatmul.mubr.f32.gmra.mrb[0].mxu0 %v23
  %v1183 = vpop.f32.mrb[0].mxu0
  %v1184 = vadd.f32 0.0, %v1183
  %v1185 = vpop.f32.mrb[0].mxu0
  %1186 = vdwg.mxu0
  %v1190 = vlaneseq
  %v1191 = vshrl.u32 %v1190, 7
  %v1192 = vsub.s32 0, %v1191
  %v1193 = vrot.slane %v20, %v1192
  %v1194 = vlaneseq
  %v1195 = vshrl.u32 %v1194, 7
  %v1196 = vsub.s32 1, %v1195
  %v1197 = vrot.slane %v20, %v1196
  %v1198 = vlaneseq
  %v1199 = vshrl.u32 %v1198, 7
  %v1200 = vsub.s32 2, %v1199
  %v1201 = vrot.slane %v20, %v1200
  %v1202 = vlaneseq
  %v1203 = vshrl.u32 %v1202, 7
  %v1204 = vsub.s32 3, %v1203
  %v1205 = vrot.slane %v20, %v1204
  %v1206 = vlaneseq
  %v1207 = vshrl.u32 %v1206, 7
  %v1208 = vsub.s32 4, %v1207
  %v1209 = vrot.slane %v20, %v1208
  %v1210 = vlaneseq
  %v1211 = vshrl.u32 %v1210, 7
  %v1212 = vsub.s32 5, %v1211
  %v1213 = vrot.slane %v20, %v1212
  %v1214 = vlaneseq
  %v1215 = vshrl.u32 %v1214, 7
  %v1216 = vsub.s32 6, %v1215
  %v1217 = vrot.slane %v20, %v1216
  %v1218 = vlaneseq
  %v1219 = vshrl.u32 %v1218, 7
  %v1220 = vsub.s32 7, %v1219
  %v1221 = vrot.slane %v20, %v1220
  %v1222 = vlaneseq
  %v1223 = vshrl.u32 %v1222, 7
  %v1224 = vsub.s32 0, %v1223
  %v1225 = vrot.slane %v21, %v1224
  %v1226 = vlaneseq
  %v1227 = vshrl.u32 %v1226, 7
  %v1228 = vsub.s32 1, %v1227
  %v1229 = vrot.slane %v21, %v1228
  %v1230 = vlaneseq
  %v1231 = vshrl.u32 %v1230, 7
  %v1232 = vsub.s32 2, %v1231
  %v1233 = vrot.slane %v21, %v1232
  %v1234 = vlaneseq
  %v1235 = vshrl.u32 %v1234, 7
  %v1236 = vsub.s32 3, %v1235
  %v1237 = vrot.slane %v21, %v1236
  %v1238 = vlaneseq
  %v1239 = vshrl.u32 %v1238, 7
  %v1240 = vsub.s32 4, %v1239
  %v1241 = vrot.slane %v21, %v1240
  %v1242 = vlaneseq
  %v1243 = vshrl.u32 %v1242, 7
  %v1244 = vsub.s32 5, %v1243
  %v1245 = vrot.slane %v21, %v1244
  %v1246 = vlaneseq
  %v1247 = vshrl.u32 %v1246, 7
  %v1248 = vsub.s32 6, %v1247
  %v1249 = vrot.slane %v21, %v1248
  %v1250 = vlaneseq
  %v1251 = vshrl.u32 %v1250, 7
  %v1252 = vsub.s32 7, %v1251
  %v1253 = vrot.slane %v21, %v1252
  %v1254 = vlaneseq
  %v1255 = vshrl.u32 %v1254, 7
  %v1256 = vsub.s32 0, %v1255
  %v1257 = vrot.slane %v22, %v1256
  %v1258 = vlaneseq
  %v1259 = vshrl.u32 %v1258, 7
  %v1260 = vsub.s32 1, %v1259
  %v1261 = vrot.slane %v22, %v1260
  %v1262 = vlaneseq
  %v1263 = vshrl.u32 %v1262, 7
  %v1264 = vsub.s32 2, %v1263
  %v1265 = vrot.slane %v22, %v1264
  %v1266 = vlaneseq
  %v1267 = vshrl.u32 %v1266, 7
  %v1268 = vsub.s32 3, %v1267
  %v1269 = vrot.slane %v22, %v1268
  %v1270 = vlaneseq
  %v1271 = vshrl.u32 %v1270, 7
  %v1272 = vsub.s32 4, %v1271
  %v1273 = vrot.slane %v22, %v1272
  %v1295 = vadd.f32 %v1193, %v474
  %v1296 = vadd.f32 %v1197, %v476
  %v1297 = vadd.f32 %v1201, %v545
  %v1298 = vadd.f32 %v1205, %v547
  %v1299 = vadd.f32 %v1209, %v616
  %v1300 = vadd.f32 %v1213, %v618
  %v1301 = vadd.f32 %v1217, %v687
  %v1302 = vadd.f32 %v1221, %v689
  %v1303 = vadd.f32 %v1225, %v758
  %v1304 = vadd.f32 %v1229, %v760
  %v1305 = vadd.f32 %v1233, %v829
  %v1306 = vadd.f32 %v1237, %v831
  %v1307 = vadd.f32 %v1241, %v900
  %v1308 = vadd.f32 %v1245, %v902
  %v1309 = vadd.f32 %v1249, %v971
  %v1310 = vadd.f32 %v1253, %v973
  %v1311 = vadd.f32 %v1257, %v1042
  %v1312 = vadd.f32 %v1261, %v1044
  %v1313 = vadd.f32 %v1265, %v1113
  %v1314 = vadd.f32 %v1269, %v1115
  %v1315 = vadd.f32 %v1273, %v1184
  %v1316 = vld [vmem:[%s1] sm:$0xff]
  %v1317 = vld [vmem:[%s1 + $0x8] sm:$0xff]
  %v1318 = vld [vmem:[%s1 + $0x10] sm:$0xff]
  %v1319 = vld [vmem:[%s1 + $0x18] sm:$0xff]
  %v1320 = vld [vmem:[%s1 + $0x20] sm:$0xff]
  %v1321 = vld [vmem:[%s1 + $0x28] sm:$0xff]
  %v1322 = vld [vmem:[%s1 + $0x30] sm:$0xff]
  %v1323 = vld [vmem:[%s1 + $0x38] sm:$0xff]
  %v1324 = vld [vmem:[%s1 + $0x40] sm:$0xff]
  %v1325 = vld [vmem:[%s1 + $0x48] sm:$0xff]
  %v1326 = vld [vmem:[%s1 + $0x50] sm:$0xff]
  %v1327 = vld [vmem:[%s1 + $0x58] sm:$0xff]
  %v1328 = vld [vmem:[%s1 + $0x60] sm:$0xff]
  %v1329 = vld [vmem:[%s1 + $0x68] sm:$0xff]
  %v1330 = vld [vmem:[%s1 + $0x70] sm:$0xff]
  %v1331 = vld [vmem:[%s1 + $0x78] sm:$0xff]
  %v1332 = vld [vmem:[%s4] sm:$0xff]
  %v1333 = vld [vmem:[%s4 + $0x8] sm:$0xff]
  %v1334 = vld [vmem:[%s4 + $0x10] sm:$0xff]
  %v1335 = vld [vmem:[%s4 + $0x18] sm:$0xff]
  %v1336 = vld [vmem:[%s4 + $0x20] sm:$0xff]
  %v1337 = vld [vmem:[%s4 + $0x28] sm:$0xff]
  %v1338 = vld [vmem:[%s4 + $0x30] sm:$0xff]
  %v1339 = vld [vmem:[%s4 + $0x38] sm:$0xff]
  %v1340 = vld [vmem:[%s4 + $0x40] sm:$0xff]
  %v1341 = vld [vmem:[%s4 + $0x48] sm:$0xff]
  %v1342 = vld [vmem:[%s4 + $0x50] sm:$0xff]
  %v1343 = vld [vmem:[%s4 + $0x58] sm:$0xff]
  %v1344 = vld [vmem:[%s4 + $0x60] sm:$0xff]
  %v1345 = vld [vmem:[%s4 + $0x68] sm:$0xff]
  %v1347 = vsel %vm403, %v1316, 0
  %v1350 = vsel %vm403, %v1317, 0
  %v1353 = vsel %vm403, %v1318, 0
  %v1356 = vsel %vm403, %v1319, 0
  %v1359 = vsel %vm403, %v1320, 0
  %v1362 = vsel %vm403, %v1321, 0
  %v1365 = vsel %vm403, %v1322, 0
  %v1368 = vsel %vm403, %v1323, 0
  %v1371 = vsel %vm403, %v1324, 0
  %v1374 = vsel %vm403, %v1325, 0
  %v1377 = vsel %vm403, %v1326, 0
  %v1380 = vsel %vm403, %v1327, 0
  %v1383 = vsel %vm403, %v1328, 0
  %v1386 = vsel %vm403, %v1329, 0
  %v1389 = vsel %vm403, %v1330, 0
  %v1392 = vsel %vm403, %v1331, 0
  %1394 = vmatprep.subr.mxu0 %v1333
  %1395 = vmatpush1.msra.mxu0 %v1332
  %1396 = vmatprep.subr.mxu0 %v1340
  %1397 = vmatpush1.msra.mxu0 %v1339
  %1398 = vmatprep.subr.mxu0 0.0
  %1399 = vmatpush1.msra.mxu0 0.0
  %1400 = vmatprep.subr.mxu0 0.0
  %1401 = vmatpush1.msra.mxu0 0.0
  %1402 = vmatprep.subr.mxu0 0.0
  %1403 = vmatpush1.msra.mxu0 0.0
  %1404 = vmatprep.subr.mxu0 0.0
  %1405 = vmatpush1.msra.mxu0 0.0
  %1406 = vmatprep.subr.mxu0 0.0
  %1407 = vmatpush1.msra.mxu0 0.0
  %1408 = vmatprep.subr.mxu0 0.0
  %1409 = vmatpush1.msra.mxu0 0.0
  %1410 = vmatprep.subr.mxu0 0.0
  %1411 = vmatpush1.msra.mxu0 0.0
  %1412 = vmatprep.subr.mxu0 0.0
  %1413 = vmatpush1.msra.mxu0 0.0
  %1414 = vmatprep.subr.mxu0 0.0
  %1415 = vmatpush1.msra.mxu0 0.0
  %1416 = vmatprep.subr.mxu0 0.0
  %1417 = vmatpush1.msra.mxu0 0.0
  %1418 = vmatprep.subr.mxu0 0.0
  %1419 = vmatpush1.msra.mxu0 0.0
  %1420 = vmatprep.subr.mxu0 0.0
  %1421 = vmatpush1.msra.mxu0 0.0
  %1422 = vmatprep.subr.mxu0 0.0
  %1423 = vmatpush1.msra.mxu0 0.0
  %1424 = vmatprep.subr.mxu0 0.0
  %1425 = vmatpush1.msra.mxu0 0.0
  %1426 = vmatprep.subr.mxu0 0.0
  %1427 = vmatpush1.msra.mxu0 0.0
  %1428 = vmatprep.subr.mxu0 0.0
  %1429 = vmatpush1.msra.mxu0 0.0
  %1430 = vmatprep.subr.mxu0 0.0
  %1431 = vmatpush1.msra.mxu0 0.0
  %1432 = vmatprep.subr.mxu0 0.0
  %1433 = vmatpush1.msra.mxu0 0.0
  %1434 = vmatprep.subr.mxu0 0.0
  %1435 = vmatpush1.msra.mxu0 0.0
  %1436 = vmatprep.subr.mxu0 0.0
  %1437 = vmatpush1.msra.mxu0 0.0
  %1438 = vmatprep.subr.mxu0 0.0
  %1439 = vmatpush1.msra.mxu0 0.0
  %1440 = vmatprep.subr.mxu0 0.0
  %1441 = vmatpush1.msra.mxu0 0.0
  %1442 = vmatprep.subr.mxu0 0.0
  %1443 = vmatpush1.msra.mxu0 0.0
  %1444 = vmatprep.subr.mxu0 0.0
  %1445 = vmatpush1.msra.mxu0 0.0
  %1446 = vmatprep.subr.mxu0 0.0
  %1447 = vmatpush1.msra.mxu0 0.0
  %1448 = vmatprep.subr.mxu0 0.0
  %1449 = vmatpush1.msra.mxu0 0.0
  %1450 = vmatprep.subr.mxu0 0.0
  %1451 = vmatpush1.msra.mxu0 0.0
  %1452 = vmatprep.subr.mxu0 0.0
  %1453 = vmatpush1.msra.mxu0 0.0
  %1454 = vmatprep.subr.mxu0 0.0
  %1455 = vmatpush1.msra.mxu0 0.0
  %1456 = vmatprep.subr.mxu0 0.0
  %1457 = vmatpush1.msra.mxu0 0.0
  %1458 = vmatprep.mubr.f32.mxu0 0.0
  %1459 = vmatmul.mubr.f32.gmra.mrb[0].mxu0 %v1347
  %v1460 = vpop.f32.mrb[0].mxu0
  %v1461 = vadd.f32 0.0, %v1460
  %v1462 = vpop.f32.mrb[0].mxu0
  %v1463 = vadd.f32 0.0, %v1462
  %1464 = vmatprep.mubr.f32.mxu0 0.0
  %1465 = vmatmul.mubr.f32.gmra.mrb[0].mxu0 %v1350
  %v1466 = vpop.f32.mrb[0].mxu0
  %v1467 = vadd.f32 0.0, %v1466
  %v1468 = vpop.f32.mrb[0].mxu0
  %v1469 = vadd.f32 0.0, %v1468
  %1470 = vmatprep.mubr.f32.mxu0 0.0
  %1471 = vmatmul.mubr.f32.gmra.mrb[0].mxu0 %v1353
  %v1472 = vpop.f32.mrb[0].mxu0
  %v1473 = vadd.f32 0.0, %v1472
  %v1474 = vpop.f32.mrb[0].mxu0
  %v1475 = vadd.f32 0.0, %v1474
  %1476 = vmatprep.mubr.f32.mxu0 0.0
  %1477 = vmatmul.mubr.f32.gmra.mrb[0].mxu0 %v1356
  %v1478 = vpop.f32.mrb[0].mxu0
  %v1479 = vadd.f32 0.0, %v1478
  %v1480 = vpop.f32.mrb[0].mxu0
  %v1481 = vadd.f32 0.0, %v1480
  %1482 = vmatprep.mubr.f32.mxu0 0.0
  %1483 = vmatmul.mubr.f32.gmra.mrb[0].mxu0 %v1359
  %v1484 = vpop.f32.mrb[0].mxu0
  %v1485 = vadd.f32 0.0, %v1484
  %v1486 = vpop.f32.mrb[0].mxu0
  %v1487 = vadd.f32 0.0, %v1486
  %1488 = vmatprep.mubr.f32.mxu0 0.0
  %1489 = vmatmul.mubr.f32.gmra.mrb[0].mxu0 %v1362
  %v1490 = vpop.f32.mrb[0].mxu0
  %v1491 = vadd.f32 0.0, %v1490
  %v1492 = vpop.f32.mrb[0].mxu0
  %v1493 = vadd.f32 0.0, %v1492
  %1494 = vmatprep.mubr.f32.mxu0 0.0
  %1495 = vmatmul.mubr.f32.gmra.mrb[0].mxu0 %v1365
  %v1496 = vpop.f32.mrb[0].mxu0
  %v1497 = vadd.f32 0.0, %v1496
  %v1498 = vpop.f32.mrb[0].mxu0
  %v1499 = vadd.f32 0.0, %v1498
  %1500 = vmatprep.mubr.f32.mxu0 0.0
  %1501 = vmatmul.mubr.f32.gmra.mrb[0].mxu0 %v1368
  %v1502 = vpop.f32.mrb[0].mxu0
  %v1503 = vadd.f32 0.0, %v1502
  %v1504 = vpop.f32.mrb[0].mxu0
  %v1505 = vadd.f32 0.0, %v1504
  %1506 = vmatprep.mubr.f32.mxu0 0.0
  %1507 = vmatmul.mubr.f32.gmra.mrb[0].mxu0 %v1371
  %v1508 = vpop.f32.mrb[0].mxu0
  %v1509 = vadd.f32 0.0, %v1508
  %v1510 = vpop.f32.mrb[0].mxu0
  %v1511 = vadd.f32 0.0, %v1510
  %1512 = vmatprep.mubr.f32.mxu0 0.0
  %1513 = vmatmul.mubr.f32.gmra.mrb[0].mxu0 %v1374
  %v1514 = vpop.f32.mrb[0].mxu0
  %v1515 = vadd.f32 0.0, %v1514
  %v1516 = vpop.f32.mrb[0].mxu0
  %v1517 = vadd.f32 0.0, %v1516
  %1518 = vmatprep.mubr.f32.mxu0 0.0
  %1519 = vmatmul.mubr.f32.gmra.mrb[0].mxu0 %v1377
  %v1520 = vpop.f32.mrb[0].mxu0
  %v1521 = vadd.f32 0.0, %v1520
  %v1522 = vpop.f32.mrb[0].mxu0
  %v1523 = vadd.f32 0.0, %v1522
  %1524 = vmatprep.mubr.f32.mxu0 0.0
  %1525 = vmatmul.mubr.f32.gmra.mrb[0].mxu0 %v1380
  %v1526 = vpop.f32.mrb[0].mxu0
  %v1527 = vadd.f32 0.0, %v1526
  %v1528 = vpop.f32.mrb[0].mxu0
  %v1529 = vadd.f32 0.0, %v1528
  %1530 = vmatprep.mubr.f32.mxu0 0.0
  %1531 = vmatmul.mubr.f32.gmra.mrb[0].mxu0 %v1383
  %v1532 = vpop.f32.mrb[0].mxu0
  %v1533 = vpop.f32.mrb[0].mxu0
  %1534 = vmatprep.mubr.f32.mxu0 0.0
  %1535 = vmatmul.mubr.f32.gmra.mrb[0].mxu0 %v1386
  %v1536 = vpop.f32.mrb[0].mxu0
  %v1537 = vpop.f32.mrb[0].mxu0
  %1538 = vmatprep.mubr.f32.mxu0 0.0
  %1539 = vmatmul.mubr.f32.gmra.mrb[0].mxu0 %v1389
  %v1540 = vpop.f32.mrb[0].mxu0
  %v1541 = vpop.f32.mrb[0].mxu0
  %1542 = vmatprep.mubr.f32.mxu0 0.0
  %1543 = vmatmul.mubr.f32.gmra.mrb[0].mxu0 %v1392
  %v1544 = vpop.f32.mrb[0].mxu0
  %v1545 = vpop.f32.mrb[0].mxu0
  %1546 = vdwg.mxu0
  %1547 = vmatprep.subr.mxu0 %v1335
  %1548 = vmatpush1.msra.mxu0 %v1334
  %1549 = vmatprep.subr.mxu0 %v1342
  %1550 = vmatpush1.msra.mxu0 %v1341
  %1551 = vmatprep.subr.mxu0 0.0
  %1552 = vmatpush1.msra.mxu0 0.0
  %1553 = vmatprep.subr.mxu0 0.0
  %1554 = vmatpush1.msra.mxu0 0.0
  %1555 = vmatprep.subr.mxu0 0.0
  %1556 = vmatpush1.msra.mxu0 0.0
  %1557 = vmatprep.subr.mxu0 0.0
  %1558 = vmatpush1.msra.mxu0 0.0
  %1559 = vmatprep.subr.mxu0 0.0
  %1560 = vmatpush1.msra.mxu0 0.0
  %1561 = vmatprep.subr.mxu0 0.0
  %1562 = vmatpush1.msra.mxu0 0.0
  %1563 = vmatprep.subr.mxu0 0.0
  %1564 = vmatpush1.msra.mxu0 0.0
  %1565 = vmatprep.subr.mxu0 0.0
  %1566 = vmatpush1.msra.mxu0 0.0
  %1567 = vmatprep.subr.mxu0 0.0
  %1568 = vmatpush1.msra.mxu0 0.0
  %1569 = vmatprep.subr.mxu0 0.0
  %1570 = vmatpush1.msra.mxu0 0.0
  %1571 = vmatprep.subr.mxu0 0.0
  %1572 = vmatpush1.msra.mxu0 0.0
  %1573 = vmatprep.subr.mxu0 0.0
  %1574 = vmatpush1.msra.mxu0 0.0
  %1575 = vmatprep.subr.mxu0 0.0
  %1576 = vmatpush1.msra.mxu0 0.0
  %1577 = vmatprep.subr.mxu0 0.0
  %1578 = vmatpush1.msra.mxu0 0.0
  %1579 = vmatprep.subr.mxu0 0.0
  %1580 = vmatpush1.msra.mxu0 0.0
  %1581 = vmatprep.subr.mxu0 0.0
  %1582 = vmatpush1.msra.mxu0 0.0
  %1583 = vmatprep.subr.mxu0 0.0
  %1584 = vmatpush1.msra.mxu0 0.0
  %1585 = vmatprep.subr.mxu0 0.0
  %1586 = vmatpush1.msra.mxu0 0.0
  %1587 = vmatprep.subr.mxu0 0.0
  %1588 = vmatpush1.msra.mxu0 0.0
  %1589 = vmatprep.subr.mxu0 0.0
  %1590 = vmatpush1.msra.mxu0 0.0
  %1591 = vmatprep.subr.mxu0 0.0
  %1592 = vmatpush1.msra.mxu0 0.0
  %1593 = vmatprep.subr.mxu0 0.0
  %1594 = vmatpush1.msra.mxu0 0.0
  %1595 = vmatprep.subr.mxu0 0.0
  %1596 = vmatpush1.msra.mxu0 0.0
  %1597 = vmatprep.subr.mxu0 0.0
  %1598 = vmatpush1.msra.mxu0 0.0
  %1599 = vmatprep.subr.mxu0 0.0
  %1600 = vmatpush1.msra.mxu0 0.0
  %1601 = vmatprep.subr.mxu0 0.0
  %1602 = vmatpush1.msra.mxu0 0.0
  %1603 = vmatprep.subr.mxu0 0.0
  %1604 = vmatpush1.msra.mxu0 0.0
  %1605 = vmatprep.subr.mxu0 0.0
  %1606 = vmatpush1.msra.mxu0 0.0
  %1607 = vmatprep.subr.mxu0 0.0
  %1608 = vmatpush1.msra.mxu0 0.0
  %1609 = vmatprep.subr.mxu0 0.0
  %1610 = vmatpush1.msra.mxu0 0.0
  %1611 = vmatprep.mubr.f32.mxu0 0.0
  %1612 = vmatmul.mubr.f32.gmra.mrb[0].mxu0 %v1347
  %v1613 = vpop.f32.mrb[0].mxu0
  %v1614 = vadd.f32 0.0, %v1613
  %v1615 = vpop.f32.mrb[0].mxu0
  %v1616 = vadd.f32 0.0, %v1615
  %1617 = vmatprep.mubr.f32.mxu0 0.0
  %1618 = vmatmul.mubr.f32.gmra.mrb[0].mxu0 %v1350
  %v1619 = vpop.f32.mrb[0].mxu0
  %v1620 = vadd.f32 0.0, %v1619
  %v1621 = vpop.f32.mrb[0].mxu0
  %v1622 = vadd.f32 0.0, %v1621
  %1623 = vmatprep.mubr.f32.mxu0 0.0
  %1624 = vmatmul.mubr.f32.gmra.mrb[0].mxu0 %v1353
  %v1625 = vpop.f32.mrb[0].mxu0
  %v1626 = vadd.f32 0.0, %v1625
  %v1627 = vpop.f32.mrb[0].mxu0
  %v1628 = vadd.f32 0.0, %v1627
  %1629 = vmatprep.mubr.f32.mxu0 0.0
  %1630 = vmatmul.mubr.f32.gmra.mrb[0].mxu0 %v1356
  %v1631 = vpop.f32.mrb[0].mxu0
  %v1632 = vadd.f32 0.0, %v1631
  %v1633 = vpop.f32.mrb[0].mxu0
  %v1634 = vadd.f32 0.0, %v1633
  %1635 = vmatprep.mubr.f32.mxu0 0.0
  %1636 = vmatmul.mubr.f32.gmra.mrb[0].mxu0 %v1359
  %v1637 = vpop.f32.mrb[0].mxu0
  %v1638 = vadd.f32 0.0, %v1637
  %v1639 = vpop.f32.mrb[0].mxu0
  %v1640 = vadd.f32 0.0, %v1639
  %1641 = vmatprep.mubr.f32.mxu0 0.0
  %1642 = vmatmul.mubr.f32.gmra.mrb[0].mxu0 %v1362
  %v1643 = vpop.f32.mrb[0].mxu0
  %v1644 = vadd.f32 0.0, %v1643
  %v1645 = vpop.f32.mrb[0].mxu0
  %v1646 = vadd.f32 0.0, %v1645
  %1647 = vmatprep.mubr.f32.mxu0 0.0
  %1648 = vmatmul.mubr.f32.gmra.mrb[0].mxu0 %v1365
  %v1649 = vpop.f32.mrb[0].mxu0
  %v1650 = vadd.f32 0.0, %v1649
  %v1651 = vpop.f32.mrb[0].mxu0
  %v1652 = vadd.f32 0.0, %v1651
  %1653 = vmatprep.mubr.f32.mxu0 0.0
  %1654 = vmatmul.mubr.f32.gmra.mrb[0].mxu0 %v1368
  %v1655 = vpop.f32.mrb[0].mxu0
  %v1656 = vadd.f32 0.0, %v1655
  %v1657 = vpop.f32.mrb[0].mxu0
  %v1658 = vadd.f32 0.0, %v1657
  %1659 = vmatprep.mubr.f32.mxu0 0.0
  %1660 = vmatmul.mubr.f32.gmra.mrb[0].mxu0 %v1371
  %v1661 = vpop.f32.mrb[0].mxu0
  %v1662 = vadd.f32 0.0, %v1661
  %v1663 = vpop.f32.mrb[0].mxu0
  %v1664 = vadd.f32 0.0, %v1663
  %1665 = vmatprep.mubr.f32.mxu0 0.0
  %1666 = vmatmul.mubr.f32.gmra.mrb[0].mxu0 %v1374
  %v1667 = vpop.f32.mrb[0].mxu0
  %v1668 = vadd.f32 0.0, %v1667
  %v1669 = vpop.f32.mrb[0].mxu0
  %v1670 = vadd.f32 0.0, %v1669
  %1671 = vmatprep.mubr.f32.mxu0 0.0
  %1672 = vmatmul.mubr.f32.gmra.mrb[0].mxu0 %v1377
  %v1673 = vpop.f32.mrb[0].mxu0
  %v1674 = vadd.f32 0.0, %v1673
  %v1675 = vpop.f32.mrb[0].mxu0
  %v1676 = vadd.f32 0.0, %v1675
  %1677 = vmatprep.mubr.f32.mxu0 0.0
  %1678 = vmatmul.mubr.f32.gmra.mrb[0].mxu0 %v1380
  %v1679 = vpop.f32.mrb[0].mxu0
  %v1680 = vadd.f32 0.0, %v1679
  %v1681 = vpop.f32.mrb[0].mxu0
  %v1682 = vadd.f32 0.0, %v1681
  %1683 = vmatprep.mubr.f32.mxu0 0.0
  %1684 = vmatmul.mubr.f32.gmra.mrb[0].mxu0 %v1383
  %v1685 = vpop.f32.mrb[0].mxu0
  %v1686 = vpop.f32.mrb[0].mxu0
  %1687 = vmatprep.mubr.f32.mxu0 0.0
  %1688 = vmatmul.mubr.f32.gmra.mrb[0].mxu0 %v1386
  %v1689 = vpop.f32.mrb[0].mxu0
  %v1690 = vpop.f32.mrb[0].mxu0
  %1691 = vmatprep.mubr.f32.mxu0 0.0
  %1692 = vmatmul.mubr.f32.gmra.mrb[0].mxu0 %v1389
  %v1693 = vpop.f32.mrb[0].mxu0
  %v1694 = vpop.f32.mrb[0].mxu0
  %1695 = vmatprep.mubr.f32.mxu0 0.0
  %1696 = vmatmul.mubr.f32.gmra.mrb[0].mxu0 %v1392
  %v1697 = vpop.f32.mrb[0].mxu0
  %v1698 = vpop.f32.mrb[0].mxu0
  %1699 = vdwg.mxu0
  %1700 = vmatprep.subr.mxu0 %v1337
  %1701 = vmatpush1.msra.mxu0 %v1336
  %1702 = vmatprep.subr.mxu0 %v1344
  %1703 = vmatpush1.msra.mxu0 %v1343
  %1704 = vmatprep.subr.mxu0 0.0
  %1705 = vmatpush1.msra.mxu0 0.0
  %1706 = vmatprep.subr.mxu0 0.0
  %1707 = vmatpush1.msra.mxu0 0.0
  %1708 = vmatprep.subr.mxu0 0.0
  %1709 = vmatpush1.msra.mxu0 0.0
  %1710 = vmatprep.subr.mxu0 0.0
  %1711 = vmatpush1.msra.mxu0 0.0
  %1712 = vmatprep.subr.mxu0 0.0
  %1713 = vmatpush1.msra.mxu0 0.0
  %1714 = vmatprep.subr.mxu0 0.0
  %1715 = vmatpush1.msra.mxu0 0.0
  %1716 = vmatprep.subr.mxu0 0.0
  %1717 = vmatpush1.msra.mxu0 0.0
  %1718 = vmatprep.subr.mxu0 0.0
  %1719 = vmatpush1.msra.mxu0 0.0
  %1720 = vmatprep.subr.mxu0 0.0
  %1721 = vmatpush1.msra.mxu0 0.0
  %1722 = vmatprep.subr.mxu0 0.0
  %1723 = vmatpush1.msra.mxu0 0.0
  %1724 = vmatprep.subr.mxu0 0.0
  %1725 = vmatpush1.msra.mxu0 0.0
  %1726 = vmatprep.subr.mxu0 0.0
  %1727 = vmatpush1.msra.mxu0 0.0
  %1728 = vmatprep.subr.mxu0 0.0
  %1729 = vmatpush1.msra.mxu0 0.0
  %1730 = vmatprep.subr.mxu0 0.0
  %1731 = vmatpush1.msra.mxu0 0.0
  %1732 = vmatprep.subr.mxu0 0.0
  %1733 = vmatpush1.msra.mxu0 0.0
  %1734 = vmatprep.subr.mxu0 0.0
  %1735 = vmatpush1.msra.mxu0 0.0
  %1736 = vmatprep.subr.mxu0 0.0
  %1737 = vmatpush1.msra.mxu0 0.0
  %1738 = vmatprep.subr.mxu0 0.0
  %1739 = vmatpush1.msra.mxu0 0.0
  %1740 = vmatprep.subr.mxu0 0.0
  %1741 = vmatpush1.msra.mxu0 0.0
  %1742 = vmatprep.subr.mxu0 0.0
  %1743 = vmatpush1.msra.mxu0 0.0
  %1744 = vmatprep.subr.mxu0 0.0
  %1745 = vmatpush1.msra.mxu0 0.0
  %1746 = vmatprep.subr.mxu0 0.0
  %1747 = vmatpush1.msra.mxu0 0.0
  %1748 = vmatprep.subr.mxu0 0.0
  %1749 = vmatpush1.msra.mxu0 0.0
  %1750 = vmatprep.subr.mxu0 0.0
  %1751 = vmatpush1.msra.mxu0 0.0
  %1752 = vmatprep.subr.mxu0 0.0
  %1753 = vmatpush1.msra.mxu0 0.0
  %1754 = vmatprep.subr.mxu0 0.0
  %1755 = vmatpush1.msra.mxu0 0.0
  %1756 = vmatprep.subr.mxu0 0.0
  %1757 = vmatpush1.msra.mxu0 0.0
  %1758 = vmatprep.subr.mxu0 0.0
  %1759 = vmatpush1.msra.mxu0 0.0
  %1760 = vmatprep.subr.mxu0 0.0
  %1761 = vmatpush1.msra.mxu0 0.0
  %1762 = vmatprep.subr.mxu0 0.0
  %1763 = vmatpush1.msra.mxu0 0.0
  %1764 = vmatprep.mubr.f32.mxu0 0.0
  %1765 = vmatmul.mubr.f32.gmra.mrb[0].mxu0 %v1347
  %v1766 = vpop.f32.mrb[0].mxu0
  %v1767 = vadd.f32 0.0, %v1766
  %v1768 = vpop.f32.mrb[0].mxu0
  %v1769 = vadd.f32 0.0, %v1768
  %1770 = vmatprep.mubr.f32.mxu0 0.0
  %1771 = vmatmul.mubr.f32.gmra.mrb[0].mxu0 %v1350
  %v1772 = vpop.f32.mrb[0].mxu0
  %v1773 = vadd.f32 0.0, %v1772
  %v1774 = vpop.f32.mrb[0].mxu0
  %v1775 = vadd.f32 0.0, %v1774
  %1776 = vmatprep.mubr.f32.mxu0 0.0
  %1777 = vmatmul.mubr.f32.gmra.mrb[0].mxu0 %v1353
  %v1778 = vpop.f32.mrb[0].mxu0
  %v1779 = vadd.f32 0.0, %v1778
  %v1780 = vpop.f32.mrb[0].mxu0
  %v1781 = vadd.f32 0.0, %v1780
  %1782 = vmatprep.mubr.f32.mxu0 0.0
  %1783 = vmatmul.mubr.f32.gmra.mrb[0].mxu0 %v1356
  %v1784 = vpop.f32.mrb[0].mxu0
  %v1785 = vadd.f32 0.0, %v1784
  %v1786 = vpop.f32.mrb[0].mxu0
  %v1787 = vadd.f32 0.0, %v1786
  %1788 = vmatprep.mubr.f32.mxu0 0.0
  %1789 = vmatmul.mubr.f32.gmra.mrb[0].mxu0 %v1359
  %v1790 = vpop.f32.mrb[0].mxu0
  %v1791 = vadd.f32 0.0, %v1790
  %v1792 = vpop.f32.mrb[0].mxu0
  %v1793 = vadd.f32 0.0, %v1792
  %1794 = vmatprep.mubr.f32.mxu0 0.0
  %1795 = vmatmul.mubr.f32.gmra.mrb[0].mxu0 %v1362
  %v1796 = vpop.f32.mrb[0].mxu0
  %v1797 = vadd.f32 0.0, %v1796
  %v1798 = vpop.f32.mrb[0].mxu0
  %v1799 = vadd.f32 0.0, %v1798
  %1800 = vmatprep.mubr.f32.mxu0 0.0
  %1801 = vmatmul.mubr.f32.gmra.mrb[0].mxu0 %v1365
  %v1802 = vpop.f32.mrb[0].mxu0
  %v1803 = vadd.f32 0.0, %v1802
  %v1804 = vpop.f32.mrb[0].mxu0
  %v1805 = vadd.f32 0.0, %v1804
  %1806 = vmatprep.mubr.f32.mxu0 0.0
  %1807 = vmatmul.mubr.f32.gmra.mrb[0].mxu0 %v1368
  %v1808 = vpop.f32.mrb[0].mxu0
  %v1809 = vadd.f32 0.0, %v1808
  %v1810 = vpop.f32.mrb[0].mxu0
  %v1811 = vadd.f32 0.0, %v1810
  %1812 = vmatprep.mubr.f32.mxu0 0.0
  %1813 = vmatmul.mubr.f32.gmra.mrb[0].mxu0 %v1371
  %v1814 = vpop.f32.mrb[0].mxu0
  %v1815 = vadd.f32 0.0, %v1814
  %v1816 = vpop.f32.mrb[0].mxu0
  %v1817 = vadd.f32 0.0, %v1816
  %1818 = vmatprep.mubr.f32.mxu0 0.0
  %1819 = vmatmul.mubr.f32.gmra.mrb[0].mxu0 %v1374
  %v1820 = vpop.f32.mrb[0].mxu0
  %v1821 = vadd.f32 0.0, %v1820
  %v1822 = vpop.f32.mrb[0].mxu0
  %v1823 = vadd.f32 0.0, %v1822
  %1824 = vmatprep.mubr.f32.mxu0 0.0
  %1825 = vmatmul.mubr.f32.gmra.mrb[0].mxu0 %v1377
  %v1826 = vpop.f32.mrb[0].mxu0
  %v1827 = vadd.f32 0.0, %v1826
  %v1828 = vpop.f32.mrb[0].mxu0
  %v1829 = vadd.f32 0.0, %v1828
  %1830 = vmatprep.mubr.f32.mxu0 0.0
  %1831 = vmatmul.mubr.f32.gmra.mrb[0].mxu0 %v1380
  %v1832 = vpop.f32.mrb[0].mxu0
  %v1833 = vadd.f32 0.0, %v1832
  %v1834 = vpop.f32.mrb[0].mxu0
  %v1835 = vadd.f32 0.0, %v1834
  %1836 = vmatprep.mubr.f32.mxu0 0.0
  %1837 = vmatmul.mubr.f32.gmra.mrb[0].mxu0 %v1383
  %v1838 = vpop.f32.mrb[0].mxu0
  %v1839 = vpop.f32.mrb[0].mxu0
  %1840 = vmatprep.mubr.f32.mxu0 0.0
  %1841 = vmatmul.mubr.f32.gmra.mrb[0].mxu0 %v1386
  %v1842 = vpop.f32.mrb[0].mxu0
  %v1843 = vpop.f32.mrb[0].mxu0
  %1844 = vmatprep.mubr.f32.mxu0 0.0
  %1845 = vmatmul.mubr.f32.gmra.mrb[0].mxu0 %v1389
  %v1846 = vpop.f32.mrb[0].mxu0
  %v1847 = vpop.f32.mrb[0].mxu0
  %1848 = vmatprep.mubr.f32.mxu0 0.0
  %1849 = vmatmul.mubr.f32.gmra.mrb[0].mxu0 %v1392
  %v1850 = vpop.f32.mrb[0].mxu0
  %v1851 = vpop.f32.mrb[0].mxu0
  %1852 = vdwg.mxu0
  %1853 = vmatprep.subr.mxu0 0.0
  %1854 = vmatpush1.msra.mxu0 %v1338
  %1855 = vmatprep.subr.mxu0 0.0
  %1856 = vmatpush1.msra.mxu0 %v1345
  %1857 = vmatprep.subr.mxu0 0.0
  %1858 = vmatpush1.msra.mxu0 0.0
  %1859 = vmatprep.subr.mxu0 0.0
  %1860 = vmatpush1.msra.mxu0 0.0
  %1861 = vmatprep.subr.mxu0 0.0
  %1862 = vmatpush1.msra.mxu0 0.0
  %1863 = vmatprep.subr.mxu0 0.0
  %1864 = vmatpush1.msra.mxu0 0.0
  %1865 = vmatprep.subr.mxu0 0.0
  %1866 = vmatpush1.msra.mxu0 0.0
  %1867 = vmatprep.subr.mxu0 0.0
  %1868 = vmatpush1.msra.mxu0 0.0
  %1869 = vmatprep.subr.mxu0 0.0
  %1870 = vmatpush1.msra.mxu0 0.0
  %1871 = vmatprep.subr.mxu0 0.0
  %1872 = vmatpush1.msra.mxu0 0.0
  %1873 = vmatprep.subr.mxu0 0.0
  %1874 = vmatpush1.msra.mxu0 0.0
  %1875 = vmatprep.subr.mxu0 0.0
  %1876 = vmatpush1.msra.mxu0 0.0
  %1877 = vmatprep.subr.mxu0 0.0
  %1878 = vmatpush1.msra.mxu0 0.0
  %1879 = vmatprep.subr.mxu0 0.0
  %1880 = vmatpush1.msra.mxu0 0.0
  %1881 = vmatprep.subr.mxu0 0.0
  %1882 = vmatpush1.msra.mxu0 0.0
  %1883 = vmatprep.subr.mxu0 0.0
  %1884 = vmatpush1.msra.mxu0 0.0
  %1885 = vmatprep.subr.mxu0 0.0
  %1886 = vmatpush1.msra.mxu0 0.0
  %1887 = vmatprep.subr.mxu0 0.0
  %1888 = vmatpush1.msra.mxu0 0.0
  %1889 = vmatprep.subr.mxu0 0.0
  %1890 = vmatpush1.msra.mxu0 0.0
  %1891 = vmatprep.subr.mxu0 0.0
  %1892 = vmatpush1.msra.mxu0 0.0
  %1893 = vmatprep.subr.mxu0 0.0
  %1894 = vmatpush1.msra.mxu0 0.0
  %1895 = vmatprep.subr.mxu0 0.0
  %1896 = vmatpush1.msra.mxu0 0.0
  %1897 = vmatprep.subr.mxu0 0.0
  %1898 = vmatpush1.msra.mxu0 0.0
  %1899 = vmatprep.subr.mxu0 0.0
  %1900 = vmatpush1.msra.mxu0 0.0
  %1901 = vmatprep.subr.mxu0 0.0
  %1902 = vmatpush1.msra.mxu0 0.0
  %1903 = vmatprep.subr.mxu0 0.0
  %1904 = vmatpush1.msra.mxu0 0.0
  %1905 = vmatprep.subr.mxu0 0.0
  %1906 = vmatpush1.msra.mxu0 0.0
  %1907 = vmatprep.subr.mxu0 0.0
  %1908 = vmatpush1.msra.mxu0 0.0
  %1909 = vmatprep.subr.mxu0 0.0
  %1910 = vmatpush1.msra.mxu0 0.0
  %1911 = vmatprep.subr.mxu0 0.0
  %1912 = vmatpush1.msra.mxu0 0.0
  %1913 = vmatprep.subr.mxu0 0.0
  %1914 = vmatpush1.msra.mxu0 0.0
  %1915 = vmatprep.subr.mxu0 0.0
  %1916 = vmatpush1.msra.mxu0 0.0
  %1917 = vmatprep.mubr.f32.mxu0 0.0
  %1918 = vmatmul.mubr.f32.gmra.mrb[0].mxu0 %v1347
  %v1919 = vpop.f32.mrb[0].mxu0
  %v1920 = vadd.f32 0.0, %v1919
  %v1921 = vpop.f32.mrb[0].mxu0
  %1922 = vmatprep.mubr.f32.mxu0 0.0
  %1923 = vmatmul.mubr.f32.gmra.mrb[0].mxu0 %v1350
  %v1924 = vpop.f32.mrb[0].mxu0
  %v1925 = vadd.f32 0.0, %v1924
  %v1926 = vpop.f32.mrb[0].mxu0
  %1927 = vmatprep.mubr.f32.mxu0 0.0
  %1928 = vmatmul.mubr.f32.gmra.mrb[0].mxu0 %v1353
  %v1929 = vpop.f32.mrb[0].mxu0
  %v1930 = vadd.f32 0.0, %v1929
  %v1931 = vpop.f32.mrb[0].mxu0
  %1932 = vmatprep.mubr.f32.mxu0 0.0
  %1933 = vmatmul.mubr.f32.gmra.mrb[0].mxu0 %v1356
  %v1934 = vpop.f32.mrb[0].mxu0
  %v1935 = vadd.f32 0.0, %v1934
  %v1936 = vpop.f32.mrb[0].mxu0
  %1937 = vmatprep.mubr.f32.mxu0 0.0
  %1938 = vmatmul.mubr.f32.gmra.mrb[0].mxu0 %v1359
  %v1939 = vpop.f32.mrb[0].mxu0
  %v1940 = vadd.f32 0.0, %v1939
  %v1941 = vpop.f32.mrb[0].mxu0
  %1942 = vmatprep.mubr.f32.mxu0 0.0
  %1943 = vmatmul.mubr.f32.gmra.mrb[0].mxu0 %v1362
  %v1944 = vpop.f32.mrb[0].mxu0
  %v1945 = vadd.f32 0.0, %v1944
  %v1946 = vpop.f32.mrb[0].mxu0
  %1947 = vmatprep.mubr.f32.mxu0 0.0
  %1948 = vmatmul.mubr.f32.gmra.mrb[0].mxu0 %v1365
  %v1949 = vpop.f32.mrb[0].mxu0
  %v1950 = vadd.f32 0.0, %v1949
  %v1951 = vpop.f32.mrb[0].mxu0
  %1952 = vmatprep.mubr.f32.mxu0 0.0
  %1953 = vmatmul.mubr.f32.gmra.mrb[0].mxu0 %v1368
  %v1954 = vpop.f32.mrb[0].mxu0
  %v1955 = vadd.f32 0.0, %v1954
  %v1956 = vpop.f32.mrb[0].mxu0
  %1957 = vmatprep.mubr.f32.mxu0 0.0
  %1958 = vmatmul.mubr.f32.gmra.mrb[0].mxu0 %v1371
  %v1959 = vpop.f32.mrb[0].mxu0
  %v1960 = vadd.f32 0.0, %v1959
  %v1961 = vpop.f32.mrb[0].mxu0
  %1962 = vmatprep.mubr.f32.mxu0 0.0
  %1963 = vmatmul.mubr.f32.gmra.mrb[0].mxu0 %v1374
  %v1964 = vpop.f32.mrb[0].mxu0
  %v1965 = vadd.f32 0.0, %v1964
  %v1966 = vpop.f32.mrb[0].mxu0
  %1967 = vmatprep.mubr.f32.mxu0 0.0
  %1968 = vmatmul.mubr.f32.gmra.mrb[0].mxu0 %v1377
  %v1969 = vpop.f32.mrb[0].mxu0
  %v1970 = vadd.f32 0.0, %v1969
  %v1971 = vpop.f32.mrb[0].mxu0
  %1972 = vmatprep.mubr.f32.mxu0 0.0
  %1973 = vmatmul.mubr.f32.gmra.mrb[0].mxu0 %v1380
  %v1974 = vpop.f32.mrb[0].mxu0
  %v1975 = vadd.f32 0.0, %v1974
  %v1976 = vpop.f32.mrb[0].mxu0
  %1977 = vmatprep.mubr.f32.mxu0 0.0
  %1978 = vmatmul.mubr.f32.gmra.mrb[0].mxu0 %v1383
  %v1979 = vpop.f32.mrb[0].mxu0
  %v1980 = vpop.f32.mrb[0].mxu0
  %1981 = vmatprep.mubr.f32.mxu0 0.0
  %1982 = vmatmul.mubr.f32.gmra.mrb[0].mxu0 %v1386
  %v1983 = vpop.f32.mrb[0].mxu0
  %v1984 = vpop.f32.mrb[0].mxu0
  %1985 = vmatprep.mubr.f32.mxu0 0.0
  %1986 = vmatmul.mubr.f32.gmra.mrb[0].mxu0 %v1389
  %v1987 = vpop.f32.mrb[0].mxu0
  %v1988 = vpop.f32.mrb[0].mxu0
  %1989 = vmatprep.mubr.f32.mxu0 0.0
  %1990 = vmatmul.mubr.f32.gmra.mrb[0].mxu0 %v1392
  %v1991 = vpop.f32.mrb[0].mxu0
  %v1992 = vpop.f32.mrb[0].mxu0
  %1993 = vdwg.mxu0
  %v1994 = vmul.f32 %v1461, %v1295
  %v1995 = vmul.f32 %v1463, %v1296
  %v1996 = vmul.f32 %v1614, %v1297
  %v1997 = vmul.f32 %v1616, %v1298
  %v1998 = vmul.f32 %v1767, %v1299
  %v1999 = vmul.f32 %v1769, %v1300
  %v2000 = vmul.f32 %v1920, %v1301
  %v2001 = vmul.f32 %v1467, %v1302
  %v2002 = vmul.f32 %v1469, %v1303
  %v2003 = vmul.f32 %v1620, %v1304
  %v2004 = vmul.f32 %v1622, %v1305
  %v2005 = vmul.f32 %v1773, %v1306
  %v2006 = vmul.f32 %v1775, %v1307
  %v2007 = vmul.f32 %v1925, %v1308
  %v2008 = vadd.f32 %v1994, %v2001
  %v2009 = vadd.f32 %v1995, %v2002
  %v2010 = vadd.f32 %v1996, %v2003
  %v2011 = vadd.f32 %v1997, %v2004
  %v2012 = vadd.f32 %v1998, %v2005
  %v2013 = vadd.f32 %v1999, %v2006
  %v2014 = vadd.f32 %v2000, %v2007
  %v2015 = vmul.f32 %v1473, %v1309
  %v2016 = vmul.f32 %v1475, %v1310
  %v2017 = vmul.f32 %v1626, %v1311
  %v2018 = vmul.f32 %v1628, %v1312
  %v2019 = vmul.f32 %v1779, %v1313
  %v2020 = vmul.f32 %v1781, %v1314
  %v2021 = vmul.f32 %v1930, %v1315
  %v2022 = vadd.f32 %v2008, %v2015
  %v2023 = vadd.f32 %v2009, %v2016
  %v2024 = vadd.f32 %v2010, %v2017
  %v2025 = vadd.f32 %v2011, %v2018
  %v2026 = vadd.f32 %v2012, %v2019
  %v2027 = vadd.f32 %v2013, %v2020
  %v2028 = vadd.f32 %v2014, %v2021
  %v2029 = vadd.f32 %v2022, %v1479
  %v2030 = vadd.f32 %v2023, %v1481
  %v2031 = vadd.f32 %v2024, %v1632
  %v2032 = vadd.f32 %v2025, %v1634
  %v2033 = vadd.f32 %v2026, %v1785
  %v2034 = vadd.f32 %v2027, %v1787
  %v2035 = vadd.f32 %v2028, %v1935
  %2036 = vst [vmem:[%s5] sm:$0xff] %v2029
  %2037 = vst [vmem:[%s5 + $0x8] sm:$0xff] %v2030
  %2038 = vst [vmem:[%s5 + $0x10] sm:$0xff] %v2031
  %2039 = vst [vmem:[%s5 + $0x18] sm:$0xff] %v2032
  %2040 = vst [vmem:[%s5 + $0x20] sm:$0xff] %v2033
  %2041 = vst [vmem:[%s5 + $0x28] sm:$0xff] %v2034
  %2042 = vst [vmem:[%s5 + $0x30] sm:$0xff] %v2035
  %v2043 = vmul.f32 %v1485, %v1295
  %v2044 = vmul.f32 %v1487, %v1296
  %v2045 = vmul.f32 %v1638, %v1297
  %v2046 = vmul.f32 %v1640, %v1298
  %v2047 = vmul.f32 %v1791, %v1299
  %v2048 = vmul.f32 %v1793, %v1300
  %v2049 = vmul.f32 %v1940, %v1301
  %v2050 = vmul.f32 %v1491, %v1302
  %v2051 = vmul.f32 %v1493, %v1303
  %v2052 = vmul.f32 %v1644, %v1304
  %v2053 = vmul.f32 %v1646, %v1305
  %v2054 = vmul.f32 %v1797, %v1306
  %v2055 = vmul.f32 %v1799, %v1307
  %v2056 = vmul.f32 %v1945, %v1308
  %v2057 = vadd.f32 %v2043, %v2050
  %v2058 = vadd.f32 %v2044, %v2051
  %v2059 = vadd.f32 %v2045, %v2052
  %v2060 = vadd.f32 %v2046, %v2053
  %v2061 = vadd.f32 %v2047, %v2054
  %v2062 = vadd.f32 %v2048, %v2055
  %v2063 = vadd.f32 %v2049, %v2056
  %v2064 = vmul.f32 %v1497, %v1309
  %v2065 = vmul.f32 %v1499, %v1310
  %v2066 = vmul.f32 %v1650, %v1311
  %v2067 = vmul.f32 %v1652, %v1312
  %v2068 = vmul.f32 %v1803, %v1313
  %v2069 = vmul.f32 %v1805, %v1314
  %v2070 = vmul.f32 %v1950, %v1315
  %v2071 = vadd.f32 %v2057, %v2064
  %v2072 = vadd.f32 %v2058, %v2065
  %v2073 = vadd.f32 %v2059, %v2066
  %v2074 = vadd.f32 %v2060, %v2067
  %v2075 = vadd.f32 %v2061, %v2068
  %v2076 = vadd.f32 %v2062, %v2069
  %v2077 = vadd.f32 %v2063, %v2070
  %v2078 = vadd.f32 %v2071, %v1503
  %v2079 = vadd.f32 %v2072, %v1505
  %v2080 = vadd.f32 %v2073, %v1656
  %v2081 = vadd.f32 %v2074, %v1658
  %v2082 = vadd.f32 %v2075, %v1809
  %v2083 = vadd.f32 %v2076, %v1811
  %v2084 = vadd.f32 %v2077, %v1955
  %s2085 = scalar_lea.vmem %s5, 56
  %2086 = vst [vmem:[%s2085] sm:$0xff] %v2078
  %2087 = vst [vmem:[%s2085 + $0x8] sm:$0xff] %v2079
  %2088 = vst [vmem:[%s2085 + $0x10] sm:$0xff] %v2080
  %2089 = vst [vmem:[%s2085 + $0x18] sm:$0xff] %v2081
  %2090 = vst [vmem:[%s2085 + $0x20] sm:$0xff] %v2082
  %2091 = vst [vmem:[%s2085 + $0x28] sm:$0xff] %v2083
  %2092 = vst [vmem:[%s2085 + $0x30] sm:$0xff] %v2084
  %v2093 = vmul.f32 %v1509, %v1295
  %v2094 = vmul.f32 %v1511, %v1296
  %v2095 = vmul.f32 %v1662, %v1297
  %v2096 = vmul.f32 %v1664, %v1298
  %v2097 = vmul.f32 %v1815, %v1299
  %v2098 = vmul.f32 %v1817, %v1300
  %v2099 = vmul.f32 %v1960, %v1301
  %v2100 = vmul.f32 %v1515, %v1302
  %v2101 = vmul.f32 %v1517, %v1303
  %v2102 = vmul.f32 %v1668, %v1304
  %v2103 = vmul.f32 %v1670, %v1305
  %v2104 = vmul.f32 %v1821, %v1306
  %v2105 = vmul.f32 %v1823, %v1307
  %v2106 = vmul.f32 %v1965, %v1308
  %v2107 = vadd.f32 %v2093, %v2100
  %v2108 = vadd.f32 %v2094, %v2101
  %v2109 = vadd.f32 %v2095, %v2102
  %v2110 = vadd.f32 %v2096, %v2103
  %v2111 = vadd.f32 %v2097, %v2104
  %v2112 = vadd.f32 %v2098, %v2105
  %v2113 = vadd.f32 %v2099, %v2106
  %v2114 = vmul.f32 %v1521, %v1309
  %v2115 = vmul.f32 %v1523, %v1310
  %v2116 = vmul.f32 %v1674, %v1311
  %v2117 = vmul.f32 %v1676, %v1312
  %v2118 = vmul.f32 %v1827, %v1313
  %v2119 = vmul.f32 %v1829, %v1314
  %v2120 = vmul.f32 %v1970, %v1315
  %v2121 = vadd.f32 %v2107, %v2114
  %v2122 = vadd.f32 %v2108, %v2115
  %v2123 = vadd.f32 %v2109, %v2116
  %v2124 = vadd.f32 %v2110, %v2117
  %v2125 = vadd.f32 %v2111, %v2118
  %v2126 = vadd.f32 %v2112, %v2119
  %v2127 = vadd.f32 %v2113, %v2120
  %v2128 = vadd.f32 %v2121, %v1527
  %v2129 = vadd.f32 %v2122, %v1529
  %v2130 = vadd.f32 %v2123, %v1680
  %v2131 = vadd.f32 %v2124, %v1682
  %v2132 = vadd.f32 %v2125, %v1833
  %v2133 = vadd.f32 %v2126, %v1835
  %v2134 = vadd.f32 %v2127, %v1975
  %s2135 = scalar_lea.vmem %s5, 112
  %2136 = vst [vmem:[%s2135] sm:$0xff] %v2128
  %2137 = vst [vmem:[%s2135 + $0x8] sm:$0xff] %v2129
  %2138 = vst [vmem:[%s2135 + $0x10] sm:$0xff] %v2130
  %2139 = vst [vmem:[%s2135 + $0x18] sm:$0xff] %v2131
  %2140 = vst [vmem:[%s2135 + $0x20] sm:$0xff] %v2132
  %2141 = vst [vmem:[%s2135 + $0x28] sm:$0xff] %v2133
  %2142 = vst [vmem:[%s2135 + $0x30] sm:$0xff] %v2134
  // Predicated region
  $region22: #{mano_forward.1} parent=0 // pred_check
    _
  $region23: #{mano_forward.1} parent=0 // pred_check_branch
    %2144 = sbr.rel (0) target = $region25
  $region24: #{mano_forward.1} parent=0 // pred_region
    _
  $region25: #{mano_forward.1} parent=0 // pred_fallthru
    _
  // Predicated region
  $region26: #{mano_forward.1} parent=0 // pred_check
    _
  $region27: #{mano_forward.1} parent=0 // pred_check_branch
    %2146 = sbr.rel (0) target = $region29
  $region28: #{mano_forward.1} parent=0 // pred_region
    _
  $region29: #{mano_forward.1} parent=0 // pred_fallthru
    _

</llo_original>
